<compile_context>
chip_gen: v7x
topology: tpu7x:2x2x1
jax: 0.10.0
libtpu: 0.0.40
codegen_flags: <defaults>
</compile_context>

<pallas_src>
import jax
import jax.numpy as jnp
from jax.experimental import pallas as pl
from jax.experimental.pallas import tpu as pltpu


# ---------------------------------------------------------------------------
# Fused kernel
# ---------------------------------------------------------------------------
def _make_fused_kernel(ksize, dilation, pad, pad_r, has_downsample, num_l_tiles):
    """pad = (K-1)*dilation causal halo; pad_r = pad rounded up to 128 lanes."""

    def kernel(*refs):
        if has_downsample:
            (x_ref, w1_ref, b1_ref, w2_ref, b2_ref, wds_ref, bds_ref,
             o_ref, xwin_ref, o1win_ref) = refs
        else:
            (x_ref, w1_ref, b1_ref, w2_ref, b2_ref,
             o_ref, xwin_ref, o1win_ref) = refs

        nb, cin, lt = x_ref.shape
        cout = o_ref.shape[1]
        base = pad_r - pad          # first valid column of the causal window

        # Reset the causal halo at the start of every batch-block sweep.
        if pad > 0:
            @pl.when(pl.program_id(1) == 0)
            def _():
                xwin_ref[:, :, :pad_r] = jnp.zeros((nb, cin, pad_r), xwin_ref.dtype)
                o1win_ref[:, :, :pad_r] = jnp.zeros((nb, cout, pad_r), o1win_ref.dtype)

        # Drop the incoming bf16 tile into the lane-aligned part of the window.
        xwin_ref[:, :, pad_r:] = x_ref[...]

        def causal_conv_relu(win_ref, row, w_ref, bias_ref):
            # sum_k W_k @ window[row, :, base + k*d : base + k*d + lt], f32 acc.
            co = w_ref.shape[1]
            acc = jnp.zeros((co, lt), jnp.float32)
            for k in range(ksize):
                s = base + k * dilation
                acc = acc + jnp.dot(w_ref[k], win_ref[row, :, s:s + lt],
                                    preferred_element_type=jnp.float32)
            return jnp.maximum(acc + bias_ref[...], 0.0)      # (co, lt) f32

        for b in range(nb):
            # ---- conv1 -> chomp -> relu (dropout = identity) ----------------
            out1 = causal_conv_relu(xwin_ref, b, w1_ref, b1_ref)
            o1win_ref[b, :, pad_r:] = out1.astype(o1win_ref.dtype)
            # ---- conv2 -> chomp -> relu (dropout = identity) ----------------
            out2 = causal_conv_relu(o1win_ref, b, w2_ref, b2_ref)
            # ---- residual (optional 1x1 downsample) + final relu ------------
            if has_downsample:
                res = jnp.dot(wds_ref[...], x_ref[b],
                              preferred_element_type=jnp.float32) + bds_ref[...]
            else:
                res = x_ref[b].astype(jnp.float32)            # Cin == Cout
            o_ref[b] = jnp.maximum(out2 + res, 0.0).astype(o_ref.dtype)

        # Carry the last `pad` columns of both windows into the next L tile.
        if pad > 0 and num_l_tiles > 1:
            xwin_ref[:, :, base:pad_r] = xwin_ref[:, :, base + lt:]
            o1win_ref[:, :, base:pad_r] = o1win_ref[:, :, base + lt:]

    return kernel


# ---------------------------------------------------------------------------
# Tile / VMEM sizing
# ---------------------------------------------------------------------------
_VMEM_BUDGET = 20 << 20     # conservative: fits v5e/v6e (128 MiB) and v7x (64 MiB)


def _round_up(v, m):
    return -(-v // m) * m


def _tile_bytes(rows, cols, itemsize):
    sub = max(32 // itemsize, 8)
    return _round_up(max(rows, 1), sub) * _round_up(max(cols, 1), 128) * itemsize


def _vmem_bytes(nb, lt, cin, cout, k, pad_r, out_itemsize):
    x_blk = nb * _tile_bytes(cin, lt, 2) * 2                      # bf16, 2 buffers
    o_blk = nb * _tile_bytes(cout, lt, out_itemsize) * 2          # 2 buffers
    win = nb * (_tile_bytes(cin, pad_r + lt, 2) + _tile_bytes(cout, pad_r + lt, 2))
    wts = 2 * (k * _tile_bytes(cout, cin, 2) + k * _tile_bytes(cout, cout, 2)
               + _tile_bytes(cout, cin, 2) + 3 * _tile_bytes(cout, 1, 4))
    return x_blk + o_blk + win + wts


def _choose_tiles(n, length, cin, cout, k, pad, out_itemsize, max_lane_tile=None):
    pad_r = _round_up(pad, 128) if pad > 0 else 0
    cap = 2048 if max_lane_tile is None else max_lane_tile
    top = (min(cap, length) // 128) * 128
    lt_cands = [c for c in range(top, 0, -128) if length % c == 0]
    if not lt_cands:
        lt_cands = [length]            # no 128-multiple divisor: one full-L tile
    lt = lt_cands[-1]
    for c in lt_cands:                 # biggest lane tile that fits the budget
        if _vmem_bytes(1, c, cin, cout, k, pad_r, out_itemsize) <= _VMEM_BUDGET:
            lt = c
            break
    nb = 1                             # batch rows per grid step
    for c in range(min(n, 8), 1, -1):
        if n % c:
            continue
        if n // c < 2:                 # keep >=2 parallel batch steps (megacore)
            continue
        if _vmem_bytes(c, lt, cin, cout, k, pad_r, out_itemsize) <= _VMEM_BUDGET:
            nb = c
            break
    need = _vmem_bytes(nb, lt, cin, cout, k, pad_r, out_itemsize)
    return lt, nb, pad_r, need


# ---------------------------------------------------------------------------
# Wrapper
# ---------------------------------------------------------------------------
def _weight_norm(v, g):
    # PyTorch weight_norm (dim=0): w = g * v / ||v||, norm over (Cin, K).
    norm = jnp.sqrt(jnp.sum(v * v, axis=(1, 2), keepdims=True))
    return g.reshape(-1, 1, 1) * v / norm


_BUFFERED_ONE_OK = [True]   # memo: does this JAX support pl.Buffered(1)?


def temporal_block_forward(x_ncl, params, *, kernel_size, dilation,
                           out_dtype=jnp.float32, max_lane_tile=None):
    """x_ncl: (N, Cin, L), PyTorch NCL layout. Returns (N, Cout, L) in out_dtype."""
    N, Cin, L = x_ncl.shape
    K = kernel_size
    pad = (K - 1) * dilation

    w1 = _weight_norm(params["conv1_v"], params["conv1_g"])      # (Cout, Cin, K)
    w2 = _weight_norm(params["conv2_v"], params["conv2_g"])      # (Cout, Cout, K)
    Cout = w1.shape[0]

    # (K, Cout, Cin) layout: kernel indexes w_ref[k] -> (Cout, Cin), no relayout.
    w1k = jnp.transpose(w1, (2, 0, 1)).astype(jnp.bfloat16)
    w2k = jnp.transpose(w2, (2, 0, 1)).astype(jnp.bfloat16)
    b1 = params["conv1_b"].reshape(Cout, 1).astype(jnp.float32)
    b2 = params["conv2_b"].reshape(Cout, 1).astype(jnp.float32)
    has_ds = "ds_w" in params

    out_itemsize = jnp.dtype(out_dtype).itemsize
    lt, nb, pad_r, need = _choose_tiles(N, L, Cin, Cout, K, pad, out_itemsize,
                                        max_lane_tile=max_lane_tile)
    n_steps, l_steps = N // nb, L // lt
    grid = (n_steps, l_steps)
    vmem_limit = int(min(48 << 20, max(24 << 20, 2 * need + (8 << 20))))

    x_bf = x_ncl.astype(jnp.bfloat16)            # halves input HBM traffic
    args = [x_bf, w1k, b1, w2k, b2]
    if has_ds:
        args += [params["ds_w"][:, :, 0].astype(jnp.bfloat16),           # (Cout, Cin)
                 params["ds_b"].reshape(Cout, 1).astype(jnp.float32)]

    kernel = _make_fused_kernel(K, dilation, pad, pad_r, has_ds, l_steps)

    def build(single_buffer_weights):
        def const_spec(shape):
            rank = len(shape)

            def imap(n, t):
                return (0,) * rank

            if single_buffer_weights:
                return pl.BlockSpec(shape, imap, pipeline_mode=pl.Buffered(1))
            return pl.BlockSpec(shape, imap)

        in_specs = [pl.BlockSpec((nb, Cin, lt), lambda n, t: (n, 0, t))]
        in_specs += [const_spec(a.shape) for a in args[1:]]
        return pl.pallas_call(
            kernel,
            out_shape=jax.ShapeDtypeStruct((N, Cout, L), out_dtype),
            grid=grid,
            in_specs=in_specs,
            out_specs=pl.BlockSpec((nb, Cout, lt), lambda n, t: (n, 0, t)),
            scratch_shapes=[pltpu.VMEM((nb, Cin, pad_r + lt), jnp.bfloat16),   # x window
                            pltpu.VMEM((nb, Cout, pad_r + lt), jnp.bfloat16)], # out1 window
            compiler_params=pltpu.CompilerParams(
                dimension_semantics=("parallel", "arbitrary"),
                vmem_limit_bytes=vmem_limit),
        )

    if _BUFFERED_ONE_OK[0]:
        try:
            return build(True)(*args)
        except Exception:
            # pl.Buffered(1) (single-buffered constant weights) not supported
            # on this JAX version -> fall back to default double buffering.
            _BUFFERED_ONE_OK[0] = False
    return build(False)(*args)


# ---------------------------------------------------------------------------
# Parameter setup
# ---------------------------------------------------------------------------
def init_temporal_block_params(key, n_inputs, n_outputs, kernel_size):
    ks = jax.random.split(key, 6)
    p = {}
    v1 = 0.01 * jax.random.normal(ks[0], (n_outputs, n_inputs, kernel_size), jnp.float32)
    p["conv1_v"] = v1
    p["conv1_g"] = jnp.sqrt(jnp.sum(v1 * v1, axis=(1, 2)))
    p["conv1_b"] = 0.05 * jax.random.normal(ks[1], (n_outputs,), jnp.float32)

    v2 = 0.01 * jax.random.normal(ks[2], (n_outputs, n_outputs, kernel_size), jnp.float32)
    p["conv2_v"] = v2
    p["conv2_g"] = jnp.sqrt(jnp.sum(v2 * v2, axis=(1, 2)))
    p["conv2_b"] = 0.05 * jax.random.normal(ks[3], (n_outputs,), jnp.float32)

    if n_inputs != n_outputs:
        p["ds_w"] = 0.01 * jax.random.normal(ks[4], (n_outputs, n_inputs, 1), jnp.float32)
        p["ds_b"] = 0.05 * jax.random.normal(ks[5], (n_outputs,), jnp.float32)
    return p


# ---------------------------------------------------------------------------
# Pure-JAX reference (validation)
# ---------------------------------------------------------------------------
def _reference_forward(x_ncl, params, *, kernel_size, dilation):
    pad = (kernel_size - 1) * dilation
    dn = ("NCH", "OIH", "NCH")

    def conv(x, w, b):
        o = jax.lax.conv_general_dilated(
            x, w, window_strides=(1,), padding=[(pad, 0)],
            rhs_dilation=(dilation,), dimension_numbers=dn)
        return jax.nn.relu(o + b[None, :, None])

    w1 = _weight_norm(params["conv1_v"], params["conv1_g"])
    w2 = _weight_norm(params["conv2_v"], params["conv2_g"])
    out = conv(conv(x_ncl, w1, params["conv1_b"]), w2, params["conv2_b"])
    if "ds_w" in params:
        res = jax.lax.conv_general_dilated(
            x_ncl, params["ds_w"], window_strides=(1,), padding=[(0, 0)],
            dimension_numbers=dn) + params["ds_b"][None, :, None]
    else:
        res = x_ncl
    return jax.nn.relu(out + res)


if __name__ == "__main__":
    key = jax.random.PRNGKey(0)
    configs = [
        # (N, Cin, Cout, L,  K, dil, max_lane_tile, out_dtype)
        (2, 4, 8, 16, 3, 2, None, jnp.float32),    # downsample, tiny full-L tile
        (2, 4, 8, 384, 3, 2, None, jnp.float32),   # downsample, one 384-wide tile
        (2, 4, 8, 384, 3, 2, 128, jnp.float32),    # forced 128 tiles -> halo-carry path
        (2, 8, 8, 384, 3, 1, 128, jnp.float32),    # identity residual + carry
        (4, 4, 8, 256, 3, 2, 128, jnp.bfloat16),   # nb=2 batch blocking + bf16 output
    ]
    for i, (N, cin, cout, L, K, dil, mlt, odt) in enumerate(configs):
        k_x, k_p, key = jax.random.split(key, 3)
        x = jax.random.normal(k_x, (N, cin, L), jnp.float32)
        params = init_temporal_block_params(k_p, cin, cout, K)

        y = jax.block_until_ready(
            temporal_block_forward(x, params, kernel_size=K, dilation=dil,
                                   out_dtype=odt, max_lane_tile=mlt))
        y_ref = _reference_forward(x, params, kernel_size=K, dilation=dil)

        assert y.shape == (N, cout, L), (i, y.shape)
        assert y.dtype == odt, (i, y.dtype)
        y_f32 = y.astype(jnp.float32)
        max_err = float(jnp.max(jnp.abs(y_f32 - y_ref)))
        assert jnp.allclose(y_f32, y_ref, atol=2e-2, rtol=2e-2), (i, max_err)

    print("KERNEL_OK")
</pallas_src>

<mosaic_0001>
module attributes {stable_mosaic.version = 11 : i64} {
  func.func @kernel(%arg0: i32, %arg1: i32, %arg2: memref<1x4x16xbf16, #tpu.memory_space<vmem>>, %arg3: memref<3x8x4xbf16, #tpu.memory_space<vmem>>, %arg4: memref<8x1xf32, #tpu.memory_space<vmem>>, %arg5: memref<3x8x8xbf16, #tpu.memory_space<vmem>>, %arg6: memref<8x1xf32, #tpu.memory_space<vmem>>, %arg7: memref<8x4xbf16, #tpu.memory_space<vmem>>, %arg8: memref<8x1xf32, #tpu.memory_space<vmem>>, %arg9: memref<1x8x16xf32, #tpu.memory_space<vmem>>, %arg10: memref<1x4x144xbf16, #tpu.memory_space<vmem>>, %arg11: memref<1x8x144xbf16, #tpu.memory_space<vmem>>) attributes {dimension_semantics = [#tpu.dimension_semantics<parallel>, #tpu.dimension_semantics<arbitrary>], iteration_bounds = array<i64: 2, 1>, scalar_prefetch = 0 : i64, scratch_operands = 2 : i64, tpu.core_type = #tpu.core_type<tc>, window_params = [{transform_indices = @transform_0, window_bounds = array<i64: 1, 4, 16>}, {pipeline_mode = #tpu.pipeline_mode<synchronous>, transform_indices = @transform_1, window_bounds = array<i64: 3, 8, 4>}, {pipeline_mode = #tpu.pipeline_mode<synchronous>, transform_indices = @transform_2, window_bounds = array<i64: 8, 1>}, {pipeline_mode = #tpu.pipeline_mode<synchronous>, transform_indices = @transform_3, window_bounds = array<i64: 3, 8, 8>}, {pipeline_mode = #tpu.pipeline_mode<synchronous>, transform_indices = @transform_4, window_bounds = array<i64: 8, 1>}, {pipeline_mode = #tpu.pipeline_mode<synchronous>, transform_indices = @transform_5, window_bounds = array<i64: 8, 4>}, {pipeline_mode = #tpu.pipeline_mode<synchronous>, transform_indices = @transform_6, window_bounds = array<i64: 8, 1>}, {transform_indices = @transform_7, window_bounds = array<i64: 1, 8, 16>}]} {
    %c0_i32 = arith.constant 0 : i32
    %0 = arith.cmpi eq, %arg1, %c0_i32 : i32
    %1 = arith.extui %0 : i1 to i32
    %c0_i32_0 = arith.constant 0 : i32
    %2 = arith.cmpi ne, %1, %c0_i32_0 : i32
    scf.if %2 {
      %cst_65 = arith.constant 0.000000e+00 : bf16
      %70 = vector.broadcast %cst_65 : bf16 to vector<1x4x128xbf16>
      %c0_66 = arith.constant 0 : index
      %c0_67 = arith.constant 0 : index
      %c0_68 = arith.constant 0 : index
      %71 = vector.load %arg10[%c0_66, %c0_67, %c0_68] : memref<1x4x144xbf16, #tpu.memory_space<vmem>>, vector<1x4x128xbf16>
      tpu.vector_store %arg10[%c0_66, %c0_67, %c0_68], %70 {strides = array<i32>} : memref<1x4x144xbf16, #tpu.memory_space<vmem>>, vector<1x4x128xbf16>,
      %cst_69 = arith.constant 0.000000e+00 : bf16
      %72 = vector.broadcast %cst_69 : bf16 to vector<1x8x128xbf16>
      %c0_70 = arith.constant 0 : index
      %c0_71 = arith.constant 0 : index
      %c0_72 = arith.constant 0 : index
      %73 = vector.load %arg11[%c0_70, %c0_71, %c0_72] : memref<1x8x144xbf16, #tpu.memory_space<vmem>>, vector<1x8x128xbf16>
      tpu.vector_store %arg11[%c0_70, %c0_71, %c0_72], %72 {strides = array<i32>} : memref<1x8x144xbf16, #tpu.memory_space<vmem>>, vector<1x8x128xbf16>,
    } else {
    }
    %c0 = arith.constant 0 : index
    %c0_1 = arith.constant 0 : index
    %c0_2 = arith.constant 0 : index
    %3 = vector.load %arg2[%c0, %c0_1, %c0_2] : memref<1x4x16xbf16, #tpu.memory_space<vmem>>, vector<1x4x16xbf16>
    %c0_3 = arith.constant 0 : index
    %c0_4 = arith.constant 0 : index
    %c128 = arith.constant 128 : index
    %4 = vector.load %arg10[%c0_3, %c0_4, %c128] : memref<1x4x144xbf16, #tpu.memory_space<vmem>>, vector<1x4x16xbf16>
    tpu.vector_store %arg10[%c0_3, %c0_4, %c128], %3 {strides = array<i32>} : memref<1x4x144xbf16, #tpu.memory_space<vmem>>, vector<1x4x16xbf16>,
    %cst = arith.constant 0.000000e+00 : f32
    %5 = vector.broadcast %cst : f32 to vector<8x16xf32>
    %c0_5 = arith.constant 0 : index
    %c0_6 = arith.constant 0 : index
    %c0_7 = arith.constant 0 : index
    %6 = vector.load %arg3[%c0_5, %c0_6, %c0_7] : memref<3x8x4xbf16, #tpu.memory_space<vmem>>, vector<1x8x4xbf16>
    %7 = vector.shape_cast %6 : vector<1x8x4xbf16> to vector<8x4xbf16>
    %c0_8 = arith.constant 0 : index
    %c0_9 = arith.constant 0 : index
    %c124 = arith.constant 124 : index
    %8 = vector.load %arg10[%c0_8, %c0_9, %c124] : memref<1x4x144xbf16, #tpu.memory_space<vmem>>, vector<1x4x16xbf16>
    %9 = vector.shape_cast %8 : vector<1x4x16xbf16> to vector<4x16xbf16>
    %cst_10 = arith.constant dense<0.000000e+00> : vector<8x16xf32>
    %10 = tpu.matmul %7, %9, %cst_10 {dimension_numbers = #tpu.dot_dimension_numbers<[1], [0], [0], [1], [0, 0, 1, 1], [], []>} : vector<8x4xbf16>, vector<4x16xbf16>, vector<8x16xf32> -> vector<8x16xf32>
    %11 = arith.addf %5, %10 : vector<8x16xf32>
    %c1 = arith.constant 1 : index
    %c0_11 = arith.constant 0 : index
    %c0_12 = arith.constant 0 : index
    %12 = vector.load %arg3[%c1, %c0_11, %c0_12] : memref<3x8x4xbf16, #tpu.memory_space<vmem>>, vector<1x8x4xbf16>
    %13 = vector.shape_cast %12 : vector<1x8x4xbf16> to vector<8x4xbf16>
    %c0_13 = arith.constant 0 : index
    %c0_14 = arith.constant 0 : index
    %c126 = arith.constant 126 : index
    %14 = vector.load %arg10[%c0_13, %c0_14, %c126] : memref<1x4x144xbf16, #tpu.memory_space<vmem>>, vector<1x4x16xbf16>
    %15 = vector.shape_cast %14 : vector<1x4x16xbf16> to vector<4x16xbf16>
    %cst_15 = arith.constant dense<0.000000e+00> : vector<8x16xf32>
    %16 = tpu.matmul %13, %15, %cst_15 {dimension_numbers = #tpu.dot_dimension_numbers<[1], [0], [0], [1], [0, 0, 1, 1], [], []>} : vector<8x4xbf16>, vector<4x16xbf16>, vector<8x16xf32> -> vector<8x16xf32>
    %17 = arith.addf %11, %16 : vector<8x16xf32>
    %c2 = arith.constant 2 : index
    %c0_16 = arith.constant 0 : index
    %c0_17 = arith.constant 0 : index
    %18 = vector.load %arg3[%c2, %c0_16, %c0_17] : memref<3x8x4xbf16, #tpu.memory_space<vmem>>, vector<1x8x4xbf16>
    %19 = vector.shape_cast %18 : vector<1x8x4xbf16> to vector<8x4xbf16>
    %c0_18 = arith.constant 0 : index
    %c0_19 = arith.constant 0 : index
    %c128_20 = arith.constant 128 : index
    %20 = vector.load %arg10[%c0_18, %c0_19, %c128_20] : memref<1x4x144xbf16, #tpu.memory_space<vmem>>, vector<1x4x16xbf16>
    %21 = vector.shape_cast %20 : vector<1x4x16xbf16> to vector<4x16xbf16>
    %cst_21 = arith.constant dense<0.000000e+00> : vector<8x16xf32>
    %22 = tpu.matmul %19, %21, %cst_21 {dimension_numbers = #tpu.dot_dimension_numbers<[1], [0], [0], [1], [0, 0, 1, 1], [], []>} : vector<8x4xbf16>, vector<4x16xbf16>, vector<8x16xf32> -> vector<8x16xf32>
    %23 = arith.addf %17, %22 : vector<8x16xf32>
    %c0_22 = arith.constant 0 : index
    %c0_23 = arith.constant 0 : index
    %24 = vector.load %arg4[%c0_22, %c0_23] : memref<8x1xf32, #tpu.memory_space<vmem>>, vector<8x1xf32>
    %25 = vector.broadcast %24 : vector<8x1xf32> to vector<8x16xf32>
    %26 = arith.addf %23, %25 : vector<8x16xf32>
    %cst_24 = arith.constant 0.000000e+00 : f32
    %27 = vector.broadcast %cst_24 : f32 to vector<8x16xf32>
    %28 = arith.maximumf %26, %27 : vector<8x16xf32>
    %29 = arith.truncf %28 : vector<8x16xf32> to vector<8x16xbf16>
    %c0_25 = arith.constant 0 : index
    %c0_26 = arith.constant 0 : index
    %c128_27 = arith.constant 128 : index
    %30 = vector.load %arg11[%c0_25, %c0_26, %c128_27] : memref<1x8x144xbf16, #tpu.memory_space<vmem>>, vector<1x8x16xbf16>
    %31 = vector.shape_cast %30 : vector<1x8x16xbf16> to vector<8x16xbf16>
    %32 = vector.shape_cast %29 : vector<8x16xbf16> to vector<1x8x16xbf16>
    tpu.vector_store %arg11[%c0_25, %c0_26, %c128_27], %32 {strides = array<i32>} : memref<1x8x144xbf16, #tpu.memory_space<vmem>>, vector<1x8x16xbf16>,
    %cst_28 = arith.constant 0.000000e+00 : f32
    %33 = vector.broadcast %cst_28 : f32 to vector<8x16xf32>
    %c0_29 = arith.constant 0 : index
    %c0_30 = arith.constant 0 : index
    %c0_31 = arith.constant 0 : index
    %34 = vector.load %arg5[%c0_29, %c0_30, %c0_31] : memref<3x8x8xbf16, #tpu.memory_space<vmem>>, vector<1x8x8xbf16>
    %35 = vector.shape_cast %34 : vector<1x8x8xbf16> to vector<8x8xbf16>
    %c0_32 = arith.constant 0 : index
    %c0_33 = arith.constant 0 : index
    %c124_34 = arith.constant 124 : index
    %36 = vector.load %arg11[%c0_32, %c0_33, %c124_34] : memref<1x8x144xbf16, #tpu.memory_space<vmem>>, vector<1x8x16xbf16>
    %37 = vector.shape_cast %36 : vector<1x8x16xbf16> to vector<8x16xbf16>
    %cst_35 = arith.constant dense<0.000000e+00> : vector<8x16xf32>
    %38 = tpu.matmul %35, %37, %cst_35 {dimension_numbers = #tpu.dot_dimension_numbers<[1], [0], [0], [1], [0, 0, 1, 1], [], []>} : vector<8x8xbf16>, vector<8x16xbf16>, vector<8x16xf32> -> vector<8x16xf32>
    %39 = arith.addf %33, %38 : vector<8x16xf32>
    %c1_36 = arith.constant 1 : index
    %c0_37 = arith.constant 0 : index
    %c0_38 = arith.constant 0 : index
    %40 = vector.load %arg5[%c1_36, %c0_37, %c0_38] : memref<3x8x8xbf16, #tpu.memory_space<vmem>>, vector<1x8x8xbf16>
    %41 = vector.shape_cast %40 : vector<1x8x8xbf16> to vector<8x8xbf16>
    %c0_39 = arith.constant 0 : index
    %c0_40 = arith.constant 0 : index
    %c126_41 = arith.constant 126 : index
    %42 = vector.load %arg11[%c0_39, %c0_40, %c126_41] : memref<1x8x144xbf16, #tpu.memory_space<vmem>>, vector<1x8x16xbf16>
    %43 = vector.shape_cast %42 : vector<1x8x16xbf16> to vector<8x16xbf16>
    %cst_42 = arith.constant dense<0.000000e+00> : vector<8x16xf32>
    %44 = tpu.matmul %41, %43, %cst_42 {dimension_numbers = #tpu.dot_dimension_numbers<[1], [0], [0], [1], [0, 0, 1, 1], [], []>} : vector<8x8xbf16>, vector<8x16xbf16>, vector<8x16xf32> -> vector<8x16xf32>
    %45 = arith.addf %39, %44 : vector<8x16xf32>
    %c2_43 = arith.constant 2 : index
    %c0_44 = arith.constant 0 : index
    %c0_45 = arith.constant 0 : index
    %46 = vector.load %arg5[%c2_43, %c0_44, %c0_45] : memref<3x8x8xbf16, #tpu.memory_space<vmem>>, vector<1x8x8xbf16>
    %47 = vector.shape_cast %46 : vector<1x8x8xbf16> to vector<8x8xbf16>
    %c0_46 = arith.constant 0 : index
    %c0_47 = arith.constant 0 : index
    %c128_48 = arith.constant 128 : index
    %48 = vector.load %arg11[%c0_46, %c0_47, %c128_48] : memref<1x8x144xbf16, #tpu.memory_space<vmem>>, vector<1x8x16xbf16>
    %49 = vector.shape_cast %48 : vector<1x8x16xbf16> to vector<8x16xbf16>
    %cst_49 = arith.constant dense<0.000000e+00> : vector<8x16xf32>
    %50 = tpu.matmul %47, %49, %cst_49 {dimension_numbers = #tpu.dot_dimension_numbers<[1], [0], [0], [1], [0, 0, 1, 1], [], []>} : vector<8x8xbf16>, vector<8x16xbf16>, vector<8x16xf32> -> vector<8x16xf32>
    %51 = arith.addf %45, %50 : vector<8x16xf32>
    %c0_50 = arith.constant 0 : index
    %c0_51 = arith.constant 0 : index
    %52 = vector.load %arg6[%c0_50, %c0_51] : memref<8x1xf32, #tpu.memory_space<vmem>>, vector<8x1xf32>
    %53 = vector.broadcast %52 : vector<8x1xf32> to vector<8x16xf32>
    %54 = arith.addf %51, %53 : vector<8x16xf32>
    %cst_52 = arith.constant 0.000000e+00 : f32
    %55 = vector.broadcast %cst_52 : f32 to vector<8x16xf32>
    %56 = arith.maximumf %54, %55 : vector<8x16xf32>
    %c0_53 = arith.constant 0 : index
    %c0_54 = arith.constant 0 : index
    %57 = vector.load %arg7[%c0_53, %c0_54] : memref<8x4xbf16, #tpu.memory_space<vmem>>, vector<8x4xbf16>
    %c0_55 = arith.constant 0 : index
    %c0_56 = arith.constant 0 : index
    %c0_57 = arith.constant 0 : index
    %58 = vector.load %arg2[%c0_55, %c0_56, %c0_57] : memref<1x4x16xbf16, #tpu.memory_space<vmem>>, vector<1x4x16xbf16>
    %59 = vector.shape_cast %58 : vector<1x4x16xbf16> to vector<4x16xbf16>
    %cst_58 = arith.constant dense<0.000000e+00> : vector<8x16xf32>
    %60 = tpu.matmul %57, %59, %cst_58 {dimension_numbers = #tpu.dot_dimension_numbers<[1], [0], [0], [1], [0, 0, 1, 1], [], []>} : vector<8x4xbf16>, vector<4x16xbf16>, vector<8x16xf32> -> vector<8x16xf32>
    %c0_59 = arith.constant 0 : index
    %c0_60 = arith.constant 0 : index
    %61 = vector.load %arg8[%c0_59, %c0_60] : memref<8x1xf32, #tpu.memory_space<vmem>>, vector<8x1xf32>
    %62 = vector.broadcast %61 : vector<8x1xf32> to vector<8x16xf32>
    %63 = arith.addf %60, %62 : vector<8x16xf32>
    %64 = arith.addf %56, %63 : vector<8x16xf32>
    %cst_61 = arith.constant 0.000000e+00 : f32
    %65 = vector.broadcast %cst_61 : f32 to vector<8x16xf32>
    %66 = arith.maximumf %64, %65 : vector<8x16xf32>
    %c0_62 = arith.constant 0 : index
    %c0_63 = arith.constant 0 : index
    %c0_64 = arith.constant 0 : index
    %67 = vector.load %arg9[%c0_62, %c0_63, %c0_64] : memref<1x8x16xf32, #tpu.memory_space<vmem>>, vector<1x8x16xf32>
    %68 = vector.shape_cast %67 : vector<1x8x16xf32> to vector<8x16xf32>
    %69 = vector.shape_cast %66 : vector<8x16xf32> to vector<1x8x16xf32>
    tpu.vector_store %arg9[%c0_62, %c0_63, %c0_64], %69 {strides = array<i32>} : memref<1x8x16xf32, #tpu.memory_space<vmem>>, vector<1x8x16xf32>,
    return
  }
  func.func @transform_0(%arg0: i32, %arg1: i32) -> (i32, i32, i32) {
    %c0_i32 = arith.constant 0 : i32
    %c0_i32_0 = arith.constant 0 : i32
    return %arg0, %c0_i32, %arg1 : i32, i32, i32
  }
  func.func @transform_1(%arg0: i32, %arg1: i32) -> (i32, i32, i32) {
    %c0_i32 = arith.constant 0 : i32
    %c0_i32_0 = arith.constant 0 : i32
    %c0_i32_1 = arith.constant 0 : i32
    %c0_i32_2 = arith.constant 0 : i32
    return %c0_i32, %c0_i32_0, %c0_i32_1 : i32, i32, i32
  }
  func.func @transform_2(%arg0: i32, %arg1: i32) -> (i32, i32) {
    %c0_i32 = arith.constant 0 : i32
    %c0_i32_0 = arith.constant 0 : i32
    %c0_i32_1 = arith.constant 0 : i32
    return %c0_i32, %c0_i32_0 : i32, i32
  }
  func.func @transform_3(%arg0: i32, %arg1: i32) -> (i32, i32, i32) {
    %c0_i32 = arith.constant 0 : i32
    %c0_i32_0 = arith.constant 0 : i32
    %c0_i32_1 = arith.constant 0 : i32
    %c0_i32_2 = arith.constant 0 : i32
    return %c0_i32, %c0_i32_0, %c0_i32_1 : i32, i32, i32
  }
  func.func @transform_4(%arg0: i32, %arg1: i32) -> (i32, i32) {
    %c0_i32 = arith.constant 0 : i32
    %c0_i32_0 = arith.constant 0 : i32
    %c0_i32_1 = arith.constant 0 : i32
    return %c0_i32, %c0_i32_0 : i32, i32
  }
  func.func @transform_5(%arg0: i32, %arg1: i32) -> (i32, i32) {
    %c0_i32 = arith.constant 0 : i32
    %c0_i32_0 = arith.constant 0 : i32
    %c0_i32_1 = arith.constant 0 : i32
    return %c0_i32, %c0_i32_0 : i32, i32
  }
  func.func @transform_6(%arg0: i32, %arg1: i32) -> (i32, i32) {
    %c0_i32 = arith.constant 0 : i32
    %c0_i32_0 = arith.constant 0 : i32
    %c0_i32_1 = arith.constant 0 : i32
    return %c0_i32, %c0_i32_0 : i32, i32
  }
  func.func @transform_7(%arg0: i32, %arg1: i32) -> (i32, i32, i32) {
    %c0_i32 = arith.constant 0 : i32
    %c0_i32_0 = arith.constant 0 : i32
    return %arg0, %c0_i32, %arg1 : i32, i32, i32
  }
}

module attributes {stable_mosaic.version = 11 : i64} {
  func.func @kernel(%arg0: i32, %arg1: i32, %arg2: memref<1x4x16xbf16, #tpu.memory_space<vmem>>, %arg3: memref<3x8x4xbf16, #tpu.memory_space<vmem>>, %arg4: memref<8x1xf32, #tpu.memory_space<vmem>>, %arg5: memref<3x8x8xbf16, #tpu.memory_space<vmem>>, %arg6: memref<8x1xf32, #tpu.memory_space<vmem>>, %arg7: memref<8x4xbf16, #tpu.memory_space<vmem>>, %arg8: memref<8x1xf32, #tpu.memory_space<vmem>>, %arg9: memref<1x8x16xf32, #tpu.memory_space<vmem>>, %arg10: memref<1x4x144xbf16, #tpu.memory_space<vmem>>, %arg11: memref<1x8x144xbf16, #tpu.memory_space<vmem>>) attributes {dimension_semantics = [#tpu.dimension_semantics<parallel>, #tpu.dimension_semantics<arbitrary>], iteration_bounds = array<i64: 2, 1>, scalar_prefetch = 0 : i64, scratch_operands = 2 : i64, tpu.core_type = #tpu.core_type<tc>, window_params = [{transform_indices = @transform_0, window_bounds = array<i64: 1, 4, 16>}, {pipeline_mode = #tpu.pipeline_mode<synchronous>, transform_indices = @transform_1, window_bounds = array<i64: 3, 8, 4>}, {pipeline_mode = #tpu.pipeline_mode<synchronous>, transform_indices = @transform_2, window_bounds = array<i64: 8, 1>}, {pipeline_mode = #tpu.pipeline_mode<synchronous>, transform_indices = @transform_3, window_bounds = array<i64: 3, 8, 8>}, {pipeline_mode = #tpu.pipeline_mode<synchronous>, transform_indices = @transform_4, window_bounds = array<i64: 8, 1>}, {pipeline_mode = #tpu.pipeline_mode<synchronous>, transform_indices = @transform_5, window_bounds = array<i64: 8, 4>}, {pipeline_mode = #tpu.pipeline_mode<synchronous>, transform_indices = @transform_6, window_bounds = array<i64: 8, 1>}, {transform_indices = @transform_7, window_bounds = array<i64: 1, 8, 16>}]} {
    %c0_i32 = arith.constant 0 : i32
    %0 = arith.cmpi eq, %arg1, %c0_i32 : i32
    %1 = arith.extui %0 : i1 to i32
    %c0_i32_0 = arith.constant 0 : i32
    %2 = arith.cmpi ne, %1, %c0_i32_0 : i32
    scf.if %2 {
      %cst_65 = arith.constant 0.000000e+00 : bf16
      %70 = vector.broadcast %cst_65 : bf16 to vector<1x4x128xbf16>
      %c0_66 = arith.constant 0 : index
      %c0_67 = arith.constant 0 : index
      %c0_68 = arith.constant 0 : index
      %71 = vector.load %arg10[%c0_66, %c0_67, %c0_68] : memref<1x4x144xbf16, #tpu.memory_space<vmem>>, vector<1x4x128xbf16>
      tpu.vector_store %arg10[%c0_66, %c0_67, %c0_68], %70 {strides = array<i32>} : memref<1x4x144xbf16, #tpu.memory_space<vmem>>, vector<1x4x128xbf16>,
      %cst_69 = arith.constant 0.000000e+00 : bf16
      %72 = vector.broadcast %cst_69 : bf16 to vector<1x8x128xbf16>
      %c0_70 = arith.constant 0 : index
      %c0_71 = arith.constant 0 : index
      %c0_72 = arith.constant 0 : index
      %73 = vector.load %arg11[%c0_70, %c0_71, %c0_72] : memref<1x8x144xbf16, #tpu.memory_space<vmem>>, vector<1x8x128xbf16>
      tpu.vector_store %arg11[%c0_70, %c0_71, %c0_72], %72 {strides = array<i32>} : memref<1x8x144xbf16, #tpu.memory_space<vmem>>, vector<1x8x128xbf16>,
    } else {
    }
    %c0 = arith.constant 0 : index
    %c0_1 = arith.constant 0 : index
    %c0_2 = arith.constant 0 : index
    %3 = vector.load %arg2[%c0, %c0_1, %c0_2] : memref<1x4x16xbf16, #tpu.memory_space<vmem>>, vector<1x4x16xbf16>
    %c0_3 = arith.constant 0 : index
    %c0_4 = arith.constant 0 : index
    %c128 = arith.constant 128 : index
    %4 = vector.load %arg10[%c0_3, %c0_4, %c128] : memref<1x4x144xbf16, #tpu.memory_space<vmem>>, vector<1x4x16xbf16>
    tpu.vector_store %arg10[%c0_3, %c0_4, %c128], %3 {strides = array<i32>} : memref<1x4x144xbf16, #tpu.memory_space<vmem>>, vector<1x4x16xbf16>,
    %cst = arith.constant 0.000000e+00 : f32
    %5 = vector.broadcast %cst : f32 to vector<8x16xf32>
    %c0_5 = arith.constant 0 : index
    %c0_6 = arith.constant 0 : index
    %c0_7 = arith.constant 0 : index
    %6 = vector.load %arg3[%c0_5, %c0_6, %c0_7] : memref<3x8x4xbf16, #tpu.memory_space<vmem>>, vector<1x8x4xbf16>
    %7 = vector.shape_cast %6 : vector<1x8x4xbf16> to vector<8x4xbf16>
    %c0_8 = arith.constant 0 : index
    %c0_9 = arith.constant 0 : index
    %c124 = arith.constant 124 : index
    %8 = vector.load %arg10[%c0_8, %c0_9, %c124] : memref<1x4x144xbf16, #tpu.memory_space<vmem>>, vector<1x4x16xbf16>
    %9 = vector.shape_cast %8 : vector<1x4x16xbf16> to vector<4x16xbf16>
    %cst_10 = arith.constant dense<0.000000e+00> : vector<8x16xf32>
    %10 = tpu.matmul %7, %9, %cst_10 {dimension_numbers = #tpu.dot_dimension_numbers<[1], [0], [0], [1], [0, 0, 1, 1], [], []>} : vector<8x4xbf16>, vector<4x16xbf16>, vector<8x16xf32> -> vector<8x16xf32>
    %11 = arith.addf %5, %10 : vector<8x16xf32>
    %c1 = arith.constant 1 : index
    %c0_11 = arith.constant 0 : index
    %c0_12 = arith.constant 0 : index
    %12 = vector.load %arg3[%c1, %c0_11, %c0_12] : memref<3x8x4xbf16, #tpu.memory_space<vmem>>, vector<1x8x4xbf16>
    %13 = vector.shape_cast %12 : vector<1x8x4xbf16> to vector<8x4xbf16>
    %c0_13 = arith.constant 0 : index
    %c0_14 = arith.constant 0 : index
    %c126 = arith.constant 126 : index
    %14 = vector.load %arg10[%c0_13, %c0_14, %c126] : memref<1x4x144xbf16, #tpu.memory_space<vmem>>, vector<1x4x16xbf16>
    %15 = vector.shape_cast %14 : vector<1x4x16xbf16> to vector<4x16xbf16>
    %cst_15 = arith.constant dense<0.000000e+00> : vector<8x16xf32>
    %16 = tpu.matmul %13, %15, %cst_15 {dimension_numbers = #tpu.dot_dimension_numbers<[1], [0], [0], [1], [0, 0, 1, 1], [], []>} : vector<8x4xbf16>, vector<4x16xbf16>, vector<8x16xf32> -> vector<8x16xf32>
    %17 = arith.addf %11, %16 : vector<8x16xf32>
    %c2 = arith.constant 2 : index
    %c0_16 = arith.constant 0 : index
    %c0_17 = arith.constant 0 : index
    %18 = vector.load %arg3[%c2, %c0_16, %c0_17] : memref<3x8x4xbf16, #tpu.memory_space<vmem>>, vector<1x8x4xbf16>
    %19 = vector.shape_cast %18 : vector<1x8x4xbf16> to vector<8x4xbf16>
    %c0_18 = arith.constant 0 : index
    %c0_19 = arith.constant 0 : index
    %c128_20 = arith.constant 128 : index
    %20 = vector.load %arg10[%c0_18, %c0_19, %c128_20] : memref<1x4x144xbf16, #tpu.memory_space<vmem>>, vector<1x4x16xbf16>
    %21 = vector.shape_cast %20 : vector<1x4x16xbf16> to vector<4x16xbf16>
    %cst_21 = arith.constant dense<0.000000e+00> : vector<8x16xf32>
    %22 = tpu.matmul %19, %21, %cst_21 {dimension_numbers = #tpu.dot_dimension_numbers<[1], [0], [0], [1], [0, 0, 1, 1], [], []>} : vector<8x4xbf16>, vector<4x16xbf16>, vector<8x16xf32> -> vector<8x16xf32>
    %23 = arith.addf %17, %22 : vector<8x16xf32>
    %c0_22 = arith.constant 0 : index
    %c0_23 = arith.constant 0 : index
    %24 = vector.load %arg4[%c0_22, %c0_23] : memref<8x1xf32, #tpu.memory_space<vmem>>, vector<8x1xf32>
    %25 = vector.broadcast %24 : vector<8x1xf32> to vector<8x16xf32>
    %26 = arith.addf %23, %25 : vector<8x16xf32>
    %cst_24 = arith.constant 0.000000e+00 : f32
    %27 = vector.broadcast %cst_24 : f32 to vector<8x16xf32>
    %28 = arith.maximumf %26, %27 : vector<8x16xf32>
    %29 = arith.truncf %28 : vector<8x16xf32> to vector<8x16xbf16>
    %c0_25 = arith.constant 0 : index
    %c0_26 = arith.constant 0 : index
    %c128_27 = arith.constant 128 : index
    %30 = vector.load %arg11[%c0_25, %c0_26, %c128_27] : memref<1x8x144xbf16, #tpu.memory_space<vmem>>, vector<1x8x16xbf16>
    %31 = vector.shape_cast %30 : vector<1x8x16xbf16> to vector<8x16xbf16>
    %32 = vector.shape_cast %29 : vector<8x16xbf16> to vector<1x8x16xbf16>
    tpu.vector_store %arg11[%c0_25, %c0_26, %c128_27], %32 {strides = array<i32>} : memref<1x8x144xbf16, #tpu.memory_space<vmem>>, vector<1x8x16xbf16>,
    %cst_28 = arith.constant 0.000000e+00 : f32
    %33 = vector.broadcast %cst_28 : f32 to vector<8x16xf32>
    %c0_29 = arith.constant 0 : index
    %c0_30 = arith.constant 0 : index
    %c0_31 = arith.constant 0 : index
    %34 = vector.load %arg5[%c0_29, %c0_30, %c0_31] : memref<3x8x8xbf16, #tpu.memory_space<vmem>>, vector<1x8x8xbf16>
    %35 = vector.shape_cast %34 : vector<1x8x8xbf16> to vector<8x8xbf16>
    %c0_32 = arith.constant 0 : index
    %c0_33 = arith.constant 0 : index
    %c124_34 = arith.constant 124 : index
    %36 = vector.load %arg11[%c0_32, %c0_33, %c124_34] : memref<1x8x144xbf16, #tpu.memory_space<vmem>>, vector<1x8x16xbf16>
    %37 = vector.shape_cast %36 : vector<1x8x16xbf16> to vector<8x16xbf16>
    %cst_35 = arith.constant dense<0.000000e+00> : vector<8x16xf32>
    %38 = tpu.matmul %35, %37, %cst_35 {dimension_numbers = #tpu.dot_dimension_numbers<[1], [0], [0], [1], [0, 0, 1, 1], [], []>} : vector<8x8xbf16>, vector<8x16xbf16>, vector<8x16xf32> -> vector<8x16xf32>
    %39 = arith.addf %33, %38 : vector<8x16xf32>
    %c1_36 = arith.constant 1 : index
    %c0_37 = arith.constant 0 : index
    %c0_38 = arith.constant 0 : index
    %40 = vector.load %arg5[%c1_36, %c0_37, %c0_38] : memref<3x8x8xbf16, #tpu.memory_space<vmem>>, vector<1x8x8xbf16>
    %41 = vector.shape_cast %40 : vector<1x8x8xbf16> to vector<8x8xbf16>
    %c0_39 = arith.constant 0 : index
    %c0_40 = arith.constant 0 : index
    %c126_41 = arith.constant 126 : index
    %42 = vector.load %arg11[%c0_39, %c0_40, %c126_41] : memref<1x8x144xbf16, #tpu.memory_space<vmem>>, vector<1x8x16xbf16>
    %43 = vector.shape_cast %42 : vector<1x8x16xbf16> to vector<8x16xbf16>
    %cst_42 = arith.constant dense<0.000000e+00> : vector<8x16xf32>
    %44 = tpu.matmul %41, %43, %cst_42 {dimension_numbers = #tpu.dot_dimension_numbers<[1], [0], [0], [1], [0, 0, 1, 1], [], []>} : vector<8x8xbf16>, vector<8x16xbf16>, vector<8x16xf32> -> vector<8x16xf32>
    %45 = arith.addf %39, %44 : vector<8x16xf32>
    %c2_43 = arith.constant 2 : index
    %c0_44 = arith.constant 0 : index
    %c0_45 = arith.constant 0 : index
    %46 = vector.load %arg5[%c2_43, %c0_44, %c0_45] : memref<3x8x8xbf16, #tpu.memory_space<vmem>>, vector<1x8x8xbf16>
    %47 = vector.shape_cast %46 : vector<1x8x8xbf16> to vector<8x8xbf16>
    %c0_46 = arith.constant 0 : index
    %c0_47 = arith.constant 0 : index
    %c128_48 = arith.constant 128 : index
    %48 = vector.load %arg11[%c0_46, %c0_47, %c128_48] : memref<1x8x144xbf16, #tpu.memory_space<vmem>>, vector<1x8x16xbf16>
    %49 = vector.shape_cast %48 : vector<1x8x16xbf16> to vector<8x16xbf16>
    %cst_49 = arith.constant dense<0.000000e+00> : vector<8x16xf32>
    %50 = tpu.matmul %47, %49, %cst_49 {dimension_numbers = #tpu.dot_dimension_numbers<[1], [0], [0], [1], [0, 0, 1, 1], [], []>} : vector<8x8xbf16>, vector<8x16xbf16>, vector<8x16xf32> -> vector<8x16xf32>
    %51 = arith.addf %45, %50 : vector<8x16xf32>
    %c0_50 = arith.constant 0 : index
    %c0_51 = arith.constant 0 : index
    %52 = vector.load %arg6[%c0_50, %c0_51] : memref<8x1xf32, #tpu.memory_space<vmem>>, vector<8x1xf32>
    %53 = vector.broadcast %52 : vector<8x1xf32> to vector<8x16xf32>
    %54 = arith.addf %51, %53 : vector<8x16xf32>
    %cst_52 = arith.constant 0.000000e+00 : f32
    %55 = vector.broadcast %cst_52 : f32 to vector<8x16xf32>
    %56 = arith.maximumf %54, %55 : vector<8x16xf32>
    %c0_53 = arith.constant 0 : index
    %c0_54 = arith.constant 0 : index
    %57 = vector.load %arg7[%c0_53, %c0_54] : memref<8x4xbf16, #tpu.memory_space<vmem>>, vector<8x4xbf16>
    %c0_55 = arith.constant 0 : index
    %c0_56 = arith.constant 0 : index
    %c0_57 = arith.constant 0 : index
    %58 = vector.load %arg2[%c0_55, %c0_56, %c0_57] : memref<1x4x16xbf16, #tpu.memory_space<vmem>>, vector<1x4x16xbf16>
    %59 = vector.shape_cast %58 : vector<1x4x16xbf16> to vector<4x16xbf16>
    %cst_58 = arith.constant dense<0.000000e+00> : vector<8x16xf32>
    %60 = tpu.matmul %57, %59, %cst_58 {dimension_numbers = #tpu.dot_dimension_numbers<[1], [0], [0], [1], [0, 0, 1, 1], [], []>} : vector<8x4xbf16>, vector<4x16xbf16>, vector<8x16xf32> -> vector<8x16xf32>
    %c0_59 = arith.constant 0 : index
    %c0_60 = arith.constant 0 : index
    %61 = vector.load %arg8[%c0_59, %c0_60] : memref<8x1xf32, #tpu.memory_space<vmem>>, vector<8x1xf32>
    %62 = vector.broadcast %61 : vector<8x1xf32> to vector<8x16xf32>
    %63 = arith.addf %60, %62 : vector<8x16xf32>
    %64 = arith.addf %56, %63 : vector<8x16xf32>
    %cst_61 = arith.constant 0.000000e+00 : f32
    %65 = vector.broadcast %cst_61 : f32 to vector<8x16xf32>
    %66 = arith.maximumf %64, %65 : vector<8x16xf32>
    %c0_62 = arith.constant 0 : index
    %c0_63 = arith.constant 0 : index
    %c0_64 = arith.constant 0 : index
    %67 = vector.load %arg9[%c0_62, %c0_63, %c0_64] : memref<1x8x16xf32, #tpu.memory_space<vmem>>, vector<1x8x16xf32>
    %68 = vector.shape_cast %67 : vector<1x8x16xf32> to vector<8x16xf32>
    %69 = vector.shape_cast %66 : vector<8x16xf32> to vector<1x8x16xf32>
    tpu.vector_store %arg9[%c0_62, %c0_63, %c0_64], %69 {strides = array<i32>} : memref<1x8x16xf32, #tpu.memory_space<vmem>>, vector<1x8x16xf32>,
    return
  }
  func.func @transform_0(%arg0: i32, %arg1: i32) -> (i32, i32, i32) {
    %c0_i32 = arith.constant 0 : i32
    %c0_i32_0 = arith.constant 0 : i32
    return %arg0, %c0_i32, %arg1 : i32, i32, i32
  }
  func.func @transform_1(%arg0: i32, %arg1: i32) -> (i32, i32, i32) {
    %c0_i32 = arith.constant 0 : i32
    %c0_i32_0 = arith.constant 0 : i32
    %c0_i32_1 = arith.constant 0 : i32
    %c0_i32_2 = arith.constant 0 : i32
    return %c0_i32, %c0_i32_0, %c0_i32_1 : i32, i32, i32
  }
  func.func @transform_2(%arg0: i32, %arg1: i32) -> (i32, i32) {
    %c0_i32 = arith.constant 0 : i32
    %c0_i32_0 = arith.constant 0 : i32
    %c0_i32_1 = arith.constant 0 : i32
    return %c0_i32, %c0_i32_0 : i32, i32
  }
  func.func @transform_3(%arg0: i32, %arg1: i32) -> (i32, i32, i32) {
    %c0_i32 = arith.constant 0 : i32
    %c0_i32_0 = arith.constant 0 : i32
    %c0_i32_1 = arith.constant 0 : i32
    %c0_i32_2 = arith.constant 0 : i32
    return %c0_i32, %c0_i32_0, %c0_i32_1 : i32, i32, i32
  }
  func.func @transform_4(%arg0: i32, %arg1: i32) -> (i32, i32) {
    %c0_i32 = arith.constant 0 : i32
    %c0_i32_0 = arith.constant 0 : i32
    %c0_i32_1 = arith.constant 0 : i32
    return %c0_i32, %c0_i32_0 : i32, i32
  }
  func.func @transform_5(%arg0: i32, %arg1: i32) -> (i32, i32) {
    %c0_i32 = arith.constant 0 : i32
    %c0_i32_0 = arith.constant 0 : i32
    %c0_i32_1 = arith.constant 0 : i32
    return %c0_i32, %c0_i32_0 : i32, i32
  }
  func.func @transform_6(%arg0: i32, %arg1: i32) -> (i32, i32) {
    %c0_i32 = arith.constant 0 : i32
    %c0_i32_0 = arith.constant 0 : i32
    %c0_i32_1 = arith.constant 0 : i32
    return %c0_i32, %c0_i32_0 : i32, i32
  }
  func.func @transform_7(%arg0: i32, %arg1: i32) -> (i32, i32, i32) {
    %c0_i32 = arith.constant 0 : i32
    %c0_i32_0 = arith.constant 0 : i32
    return %arg0, %c0_i32, %arg1 : i32, i32, i32
  }
}

</mosaic_0001>

<llo_original>
// kernel: tpu_custom_call.1
$region0: #{tpu_custom_call.1}
  #allocation0 [shape = 'u32[]', space=smem, size = 0x4, offset = 0x4, fixed_abs, tag = 'smem constant byte address 0x4 - core index']
  #allocation1 [shape = 'u32[144,128]{1,0:T(1,128)}', space=vmem, size = 0x12000, scoped, tag = 'internal scratch']
  #allocation2 [shape = 'bf16[1,4,144]{2,1,0:T(4,128)(2,1)}', space=vmem, size = 0x800, scoped, tag = 'scratch operand']
  #allocation3 [shape = 'bf16[1,8,144]{2,1,0:T(8,128)(2,1)}', space=vmem, size = 0x1000, scoped, tag = 'scratch operand']
  %s0 = inlined_call_operand.vmem [shape: bf16[2,4,16], index: 0, kind: input, shape index: {}]
  %s1 = inlined_call_operand.vmem [shape: bf16[3,8,4], index: 1, kind: input, shape index: {}]
  %s2 = inlined_call_operand.vmem [shape: f32[8,1], index: 2, kind: input, shape index: {}]
  %s3 = inlined_call_operand.vmem [shape: bf16[3,8,8], index: 3, kind: input, shape index: {}]
  %s4 = inlined_call_operand.vmem [shape: f32[8,1], index: 4, kind: input, shape index: {}]
  %s5 = inlined_call_operand.vmem [shape: bf16[8,4], index: 5, kind: input, shape index: {}]
  %s6 = inlined_call_operand.vmem [shape: f32[8,1], index: 6, kind: input, shape index: {}]
  %s7 = inlined_call_operand.hbm [shape: f32[2,8,16], index: 7, kind: output, shape index: {}]
  %s8 = sld [smem:[#allocation0]]
  $region65: #{tpu_custom_call.1} parent=0
    _
  %s10 = ssub.s32 1, %s8
  %s11 = scalar_select 0, %s10, %s8
  $region1: #{tpu_custom_call.1} parent=0
    #allocation4 [shape = 'u8[8192]{0}', space=vmem, size = 0x2000, scoped, tag = 'output window, operand 0']
    #allocation5 [shape = 's32[2]{0}', space=sflag, size = 0x8, scoped, tag = 'scoped memory for tpu_custom_call.1']
    %12 = vsyncpa [#allocation5], 0
    %s13 = scalar_lea.sflag [#allocation5], 1
    %14 = vsyncpa %s13, 0
    loop: start=0, step=1, limit=4
    $region2: #{tpu_custom_call.1} parent=1 // loop_pre_header
      _
    $region3: #{tpu_custom_call.1} parent=1 // loop_header
      %s16 = sphi 0, %s20
      %p17 = scmp.ge.s32.totalorder %s16, 4
      %s23 = sphi 0, %s35
      %s24 = sphi 0, %s31
      %s25 = sphi 0, %s23
      %s26 = sphi 0, %s24
      %s27 = sphi 0, %s25
      %s28 = sphi 0, %s26
      %s40 = sphi 0, %s42
      %s43 = sphi 0, %s40
      %s44 = sphi 0, %s43
      %s60 = sphi 0, %s44
      %s64 = sphi 0, %s64
      %s66 = sphi 0, %s64
      %s67 = sphi 0, %s66
      %s81 = sphi 0, %s67
      %s85 = sphi 0, %s85
      %s87 = sphi 0, %s85
      %s88 = sphi 0, %s87
      %s102 = sphi 0, %s88
      %s106 = sphi 0, %s106
      %s108 = sphi 0, %s106
      %s109 = sphi 0, %s108
      %s123 = sphi 0, %s109
      %s127 = sphi 0, %s127
      %s129 = sphi 0, %s127
      %s130 = sphi 0, %s129
      %s144 = sphi 0, %s130
      %s148 = sphi 0, %s148
      %s150 = sphi 0, %s148
      %s151 = sphi 0, %s150
      %s165 = sphi 0, %s151
      %s169 = sphi 0, %s169
      %s171 = sphi 0, %s169
      %s172 = sphi 0, %s171
      %s186 = sphi 0, %s172
      %s194 = sphi 0, %s196
      %s197 = sphi 0, %s194
      %s198 = sphi 0, %s197
      %s214 = sphi 0, %s198
    $region4: #{tpu_custom_call.1} parent=1 // loop_header_branch
      %19 = sbr.rel (%p17) target = $region8
    $region5: #{tpu_custom_call.1} parent=1 // loop_body
      %s21 = ssub.s32 %s16, 1
      %s22 = ssub.s32 %s16, 2
      %s29 = sadd.s32 1, %s24
      %p30 = scmp.ge.s32.totalorder %s29, 1
      %s31 = scalar_select %p30, 0, %s29
      %s32 = sadd.s32 1, %s23
      %s33 = scalar_select %p30, %s32, %s23
      %p34 = scmp.ge.s32.totalorder %s33, 2
      %s35 = scalar_select %p34, 0, %s33
      %s36 = ssub.s32 %s23, %s35
      %s37 = ssub.s32 %s24, %s31
      %s38 = sor.u32 %s36, %s37
      %p39 = scmp.eq.s32.totalorder %s38, 0
      %s41 = sadd.s32 %s40, 1
      %s42 = scalar_select %p39, %s40, %s41
      %p45 = pneg %p39
      %p46 = scmp.eq.s32.totalorder %s16, 1
      %p47 = por %p45, %p46
      %p48 = scmp.ne.s32.totalorder %s40, %s43
      %p49 = scmp.eq.s32.totalorder %s16, 0
      %p50 = por %p48, %p49
      %p51 = scmp.ne.s32.totalorder %s40, %s43
      %p52 = scmp.eq.s32.totalorder %s21, 1
      %p53 = por %p51, %p52
      %p54 = scmp.ne.s32.totalorder %s43, %s44
      %p55 = scmp.eq.s32.totalorder %s21, 0
      %p56 = por %p54, %p55
      %p57 = scmp.ne.s32.totalorder %s43, %s44
      %p58 = scmp.eq.s32.totalorder %s22, 1
      %p59 = por %p57, %p58
      %p61 = scmp.ne.s32.totalorder %s44, %s60
      %p62 = scmp.eq.s32.totalorder %s22, 0
      %p63 = por %p61, %p62
      %s65 = sadd.s32 %s64, 1
      %p68 = scmp.eq.s32.totalorder %s16, 1
      %p69 = scmp.ne.s32.totalorder %s64, %s66
      %p70 = scmp.eq.s32.totalorder %s16, 0
      %p71 = por %p69, %p70
      %p72 = scmp.ne.s32.totalorder %s64, %s66
      %p73 = scmp.eq.s32.totalorder %s21, 1
      %p74 = por %p72, %p73
      %p75 = scmp.ne.s32.totalorder %s66, %s67
      %p76 = scmp.eq.s32.totalorder %s21, 0
      %p77 = por %p75, %p76
      %p78 = scmp.ne.s32.totalorder %s66, %s67
      %p79 = scmp.eq.s32.totalorder %s22, 1
      %p80 = por %p78, %p79
      %p82 = scmp.ne.s32.totalorder %s67, %s81
      %p83 = scmp.eq.s32.totalorder %s22, 0
      %p84 = por %p82, %p83
      %s86 = sadd.s32 %s85, 1
      %p89 = scmp.eq.s32.totalorder %s16, 1
      %p90 = scmp.ne.s32.totalorder %s85, %s87
      %p91 = scmp.eq.s32.totalorder %s16, 0
      %p92 = por %p90, %p91
      %p93 = scmp.ne.s32.totalorder %s85, %s87
      %p94 = scmp.eq.s32.totalorder %s21, 1
      %p95 = por %p93, %p94
      %p96 = scmp.ne.s32.totalorder %s87, %s88
      %p97 = scmp.eq.s32.totalorder %s21, 0
      %p98 = por %p96, %p97
      %p99 = scmp.ne.s32.totalorder %s87, %s88
      %p100 = scmp.eq.s32.totalorder %s22, 1
      %p101 = por %p99, %p100
      %p103 = scmp.ne.s32.totalorder %s88, %s102
      %p104 = scmp.eq.s32.totalorder %s22, 0
      %p105 = por %p103, %p104
      %s107 = sadd.s32 %s106, 1
      %p110 = scmp.eq.s32.totalorder %s16, 1
      %p111 = scmp.ne.s32.totalorder %s106, %s108
      %p112 = scmp.eq.s32.totalorder %s16, 0
      %p113 = por %p111, %p112
      %p114 = scmp.ne.s32.totalorder %s106, %s108
      %p115 = scmp.eq.s32.totalorder %s21, 1
      %p116 = por %p114, %p115
      %p117 = scmp.ne.s32.totalorder %s108, %s109
      %p118 = scmp.eq.s32.totalorder %s21, 0
      %p119 = por %p117, %p118
      %p120 = scmp.ne.s32.totalorder %s108, %s109
      %p121 = scmp.eq.s32.totalorder %s22, 1
      %p122 = por %p120, %p121
      %p124 = scmp.ne.s32.totalorder %s109, %s123
      %p125 = scmp.eq.s32.totalorder %s22, 0
      %p126 = por %p124, %p125
      %s128 = sadd.s32 %s127, 1
      %p131 = scmp.eq.s32.totalorder %s16, 1
      %p132 = scmp.ne.s32.totalorder %s127, %s129
      %p133 = scmp.eq.s32.totalorder %s16, 0
      %p134 = por %p132, %p133
      %p135 = scmp.ne.s32.totalorder %s127, %s129
      %p136 = scmp.eq.s32.totalorder %s21, 1
      %p137 = por %p135, %p136
      %p138 = scmp.ne.s32.totalorder %s129, %s130
      %p139 = scmp.eq.s32.totalorder %s21, 0
      %p140 = por %p138, %p139
      %p141 = scmp.ne.s32.totalorder %s129, %s130
      %p142 = scmp.eq.s32.totalorder %s22, 1
      %p143 = por %p141, %p142
      %p145 = scmp.ne.s32.totalorder %s130, %s144
      %p146 = scmp.eq.s32.totalorder %s22, 0
      %p147 = por %p145, %p146
      %s149 = sadd.s32 %s148, 1
      %p152 = scmp.eq.s32.totalorder %s16, 1
      %p153 = scmp.ne.s32.totalorder %s148, %s150
      %p154 = scmp.eq.s32.totalorder %s16, 0
      %p155 = por %p153, %p154
      %p156 = scmp.ne.s32.totalorder %s148, %s150
      %p157 = scmp.eq.s32.totalorder %s21, 1
      %p158 = por %p156, %p157
      %p159 = scmp.ne.s32.totalorder %s150, %s151
      %p160 = scmp.eq.s32.totalorder %s21, 0
      %p161 = por %p159, %p160
      %p162 = scmp.ne.s32.totalorder %s150, %s151
      %p163 = scmp.eq.s32.totalorder %s22, 1
      %p164 = por %p162, %p163
      %p166 = scmp.ne.s32.totalorder %s151, %s165
      %p167 = scmp.eq.s32.totalorder %s22, 0
      %p168 = por %p166, %p167
      %s170 = sadd.s32 %s169, 1
      %p173 = scmp.eq.s32.totalorder %s16, 1
      %p174 = scmp.ne.s32.totalorder %s169, %s171
      %p175 = scmp.eq.s32.totalorder %s16, 0
      %p176 = por %p174, %p175
      %p177 = scmp.ne.s32.totalorder %s169, %s171
      %p178 = scmp.eq.s32.totalorder %s21, 1
      %p179 = por %p177, %p178
      %p180 = scmp.ne.s32.totalorder %s171, %s172
      %p181 = scmp.eq.s32.totalorder %s21, 0
      %p182 = por %p180, %p181
      %p183 = scmp.ne.s32.totalorder %s171, %s172
      %p184 = scmp.eq.s32.totalorder %s22, 1
      %p185 = por %p183, %p184
      %p187 = scmp.ne.s32.totalorder %s172, %s186
      %p188 = scmp.eq.s32.totalorder %s22, 0
      %p189 = por %p187, %p188
      %s190 = ssub.s32 %s23, %s35
      %s191 = ssub.s32 %s24, %s31
      %s192 = sor.u32 %s190, %s191
      %p193 = scmp.eq.s32.totalorder %s192, 0
      %s195 = sadd.s32 %s194, 1
      %s196 = scalar_select %p193, %s194, %s195
      %p199 = pneg %p193
      %p200 = scmp.eq.s32.totalorder %s16, 1
      %p201 = por %p199, %p200
      %p202 = scmp.ne.s32.totalorder %s194, %s197
      %p203 = scmp.eq.s32.totalorder %s16, 0
      %p204 = por %p202, %p203
      %p205 = scmp.ne.s32.totalorder %s194, %s197
      %p206 = scmp.eq.s32.totalorder %s21, 1
      %p207 = por %p205, %p206
      %p208 = scmp.ne.s32.totalorder %s197, %s198
      %p209 = scmp.eq.s32.totalorder %s21, 0
      %p210 = por %p208, %p209
      %p211 = scmp.ne.s32.totalorder %s197, %s198
      %p212 = scmp.eq.s32.totalorder %s22, 1
      %p213 = por %p211, %p212
      %p215 = scmp.ne.s32.totalorder %s198, %s214
      %p216 = scmp.eq.s32.totalorder %s22, 0
      %p217 = por %p215, %p216
      %p218 = scmp.le.s32.totalorder 1, %s16
      %p219 = scmp.lt.s32.totalorder %s16, 3
      %p220 = pnand %p218, %p219
      %p221 = pneg %p220
      // Predicated region
      $region9: #{tpu_custom_call.1} parent=5 // pred_check
        _
      $region10: #{tpu_custom_call.1} parent=5 // pred_check_branch
        %223 = sbr.rel (%p220) target = $region12
      $region11: #{tpu_custom_call.1} parent=5 // pred_region
        %s224 = ssub.s32 %s16, 1
        // Predicated region
        $region13: #{tpu_custom_call.1} parent=11 // pred_check
          %p225 = pneg %p77
        $region14: #{tpu_custom_call.1} parent=11 // pred_check_branch
          %227 = sbr.rel (%p225) target = $region16
        $region15: #{tpu_custom_call.1} parent=11 // pred_region
          _
        $region16: #{tpu_custom_call.1} parent=11 // pred_fallthru
          _
        // Predicated region
        $region17: #{tpu_custom_call.1} parent=11 // pred_check
          %p228 = pneg %p98
        $region18: #{tpu_custom_call.1} parent=11 // pred_check_branch
          %230 = sbr.rel (%p228) target = $region20
        $region19: #{tpu_custom_call.1} parent=11 // pred_region
          _
        $region20: #{tpu_custom_call.1} parent=11 // pred_fallthru
          _
        // Predicated region
        $region21: #{tpu_custom_call.1} parent=11 // pred_check
          %p231 = pneg %p119
        $region22: #{tpu_custom_call.1} parent=11 // pred_check_branch
          %233 = sbr.rel (%p231) target = $region24
        $region23: #{tpu_custom_call.1} parent=11 // pred_region
          _
        $region24: #{tpu_custom_call.1} parent=11 // pred_fallthru
          _
        // Predicated region
        $region25: #{tpu_custom_call.1} parent=11 // pred_check
          %p234 = pneg %p140
        $region26: #{tpu_custom_call.1} parent=11 // pred_check_branch
          %236 = sbr.rel (%p234) target = $region28
        $region27: #{tpu_custom_call.1} parent=11 // pred_region
          _
        $region28: #{tpu_custom_call.1} parent=11 // pred_fallthru
          _
        // Predicated region
        $region29: #{tpu_custom_call.1} parent=11 // pred_check
          %p237 = pneg %p161
        $region30: #{tpu_custom_call.1} parent=11 // pred_check_branch
          %239 = sbr.rel (%p237) target = $region32
        $region31: #{tpu_custom_call.1} parent=11 // pred_region
          _
        $region32: #{tpu_custom_call.1} parent=11 // pred_fallthru
          _
        // Predicated region
        $region33: #{tpu_custom_call.1} parent=11 // pred_check
          %p240 = pneg %p182
        $region34: #{tpu_custom_call.1} parent=11 // pred_check_branch
          %242 = sbr.rel (%p240) target = $region36
        $region35: #{tpu_custom_call.1} parent=11 // pred_region
          _
        $region36: #{tpu_custom_call.1} parent=11 // pred_fallthru
          _
      $region12: #{tpu_custom_call.1} parent=5 // pred_fallthru
        _
      %p243 = scmp.lt.s32.totalorder %s16, 2
      // Predicated region
      $region37: #{tpu_custom_call.1} parent=5 // pred_check
        %p244 = pneg %p243
      $region38: #{tpu_custom_call.1} parent=5 // pred_check_branch
        %246 = sbr.rel (%p244) target = $region40
      $region39: #{tpu_custom_call.1} parent=5 // pred_region
        // Predicated region
        $region41: #{tpu_custom_call.1} parent=39 // pred_check
          %p247 = pneg %p50
        $region42: #{tpu_custom_call.1} parent=39 // pred_check_branch
          %249 = sbr.rel (%p247) target = $region44
        $region43: #{tpu_custom_call.1} parent=39 // pred_region
          %p250 = scmp.lt.s32.totalorder %s23, 1
          %s251 = scalar_select %p250, %s23, 1
          %p252 = scmp.lt.s32.totalorder %s24, 0
          %s253 = scalar_select %p252, %s24, 0
          %s254 = sadd.s32 %s253, %s251
          %s255 = smul.addr %s254, 2
          %s256 = scalar_lea.vmem %s0, %s255
        $region44: #{tpu_custom_call.1} parent=39 // pred_fallthru
          _
      $region40: #{tpu_custom_call.1} parent=5 // pred_fallthru
        _
      %p257 = scmp.le.s32.totalorder 1, %s16
      %p258 = scmp.lt.s32.totalorder %s16, 3
      %p259 = pnand %p257, %p258
      %p260 = pneg %p259
      // Predicated region
      $region45: #{tpu_custom_call.1} parent=5 // pred_check
        _
      $region46: #{tpu_custom_call.1} parent=5 // pred_check_branch
        %262 = sbr.rel (%p259) target = $region48
      $region47: #{tpu_custom_call.1} parent=5 // pred_region
        %s263 = ssub.s32 %s16, 1
        %p264 = scmp.lt.s32.totalorder %s25, 1
        %s265 = scalar_select %p264, %s25, 1
        %p266 = scmp.lt.s32.totalorder %s26, 0
        %s267 = scalar_select %p266, %s26, 0
        %s268 = sadd.s32 %s267, %s265
        %s269 = smul.addr %s268, 2
        %s270 = scalar_lea.vmem %s0, %s269
        %p271 = pneg %p56
        %p272 = pneg %p53
        %p273 = pneg %p77
        %p274 = pneg %p74
        %p275 = pneg %p98
        %p276 = pneg %p95
        %p277 = pneg %p119
        %p278 = pneg %p116
        %p279 = pneg %p140
        %p280 = pneg %p137
        %p281 = pneg %p161
        %p282 = pneg %p158
        %p283 = pneg %p182
        %p284 = pneg %p179
        %p285 = pneg %p210
        %p286 = pneg %p207
        %s287 = sand.u32 %s197, 1
        %s288 = scalar_lea.sflag [#allocation5], %s287
        %s289 = sand.u32 %s197, 1
        %s290 = smul.addr %s289, 8
        %s291 = scalar_lea.vmem [#allocation4], %s290
        %p292 = scmp.lt.s32.totalorder %s25, 1
        %s293 = scalar_select %p292, %s25, 1
        %p294 = scmp.lt.s32.totalorder %s26, 0
        %s295 = scalar_select %p294, %s26, 0
        %s296 = sadd.s32 %s295, %s293
        %s297 = smul.addr %s296, 2
        %s298 = scalar_lea.vmem %s0, %s297
        %p300 = scmp.eq.s32.totalorder %s26, 0
        // Predicated region
        $region49: #{tpu_custom_call.1} parent=47 // pred_check
          %p301 = pneg %p300
        $region50: #{tpu_custom_call.1} parent=47 // pred_check_branch
          %303 = sbr.rel (%p301) target = $region52
        $region51: #{tpu_custom_call.1} parent=47 // pred_region
          %304 = vst [vmem:[#allocation2] sm:$0x3] 0
          %305 = vst [vmem:[#allocation3] sm:$0xf] 0
        $region52: #{tpu_custom_call.1} parent=47 // pred_fallthru
          _
        %v306 = vld [vmem:[%s298] sm:$0x3]
        %vm307 = vcmask 123904
        %308 = vst.msk [vmem:[#allocation2 + $0x2] sm:$0x3] %vm307, %v306
        %v309 = vld [vmem:[%s1] sm:$0xf]
        %v310 = vld [vmem:[#allocation2] sm:$0xf]
        %s311 = scalar_lea.vmem %s1, 4
        %v312 = vld [vmem:[%s311] sm:$0xf]
        %v315 = vunpack.c.l.s4 1983009808
        %v316 = vunpack.c.0.s8 %v315
        %v317 = vlaneseq
        %v318 = vshrl.u32 %v317, 7
        %v319 = vsub.s32 %v316, %v318
        %v320 = vrot.slane %v310, %v319
        %v321 = vcombine.high %v320, %v320
        %322 = vrot.lane.b32.xlu0 %v320, 2
        %v323 = vpop.permute.xlu0 %322
        %324 = vrot.lane.b32.xlu0 %v321, 2
        %v325 = vpop.permute.xlu0 %324
        %vm326 = vcmask 15360
        %v327 = vsel %vm326, %v323, %v325
        %vm328 = vcmask 31744
        %v330 = vsel %vm328, %v312, 0
        %vm332 = vcmask 1041408
        %v334 = vsel %vm332, %v327, 0
        %336 = vmatprep.subr.bf16.mxu0 0
        %337 = vmatpush1.bf16.msra.mxu0 %v334
        %338 = vmatprep.subr.bf16.mxu0 0
        %339 = vmatpush1.bf16.msra.mxu0 0
        %340 = vmatprep.subr.bf16.mxu0 0
        %341 = vmatpush1.bf16.msra.mxu0 0
        %342 = vmatprep.subr.bf16.mxu0 0
        %343 = vmatpush1.bf16.msra.mxu0 0
        %344 = vmatprep.subr.bf16.mxu0 0
        %345 = vmatpush1.bf16.msra.mxu0 0
        %346 = vmatprep.subr.bf16.mxu0 0
        %347 = vmatpush1.bf16.msra.mxu0 0
        %348 = vmatprep.subr.bf16.mxu0 0
        %349 = vmatpush1.bf16.msra.mxu0 0
        %350 = vmatprep.subr.bf16.mxu0 0
        %351 = vmatpush1.bf16.msra.mxu0 0
        %352 = vmatprep.subr.bf16.mxu0 0
        %353 = vmatpush1.bf16.msra.mxu0 0
        %354 = vmatprep.subr.bf16.mxu0 0
        %355 = vmatpush1.bf16.msra.mxu0 0
        %356 = vmatprep.subr.bf16.mxu0 0
        %357 = vmatpush1.bf16.msra.mxu0 0
        %358 = vmatprep.subr.bf16.mxu0 0
        %359 = vmatpush1.bf16.msra.mxu0 0
        %360 = vmatprep.subr.bf16.mxu0 0
        %361 = vmatpush1.bf16.msra.mxu0 0
        %362 = vmatprep.subr.bf16.mxu0 0
        %363 = vmatpush1.bf16.msra.mxu0 0
        %364 = vmatprep.subr.bf16.mxu0 0
        %365 = vmatpush1.bf16.msra.mxu0 0
        %366 = vmatprep.subr.bf16.mxu0 0
        %367 = vmatpush1.bf16.msra.mxu0 0
        %368 = vmatprep.mubr.bf16.mxu0 0
        %369 = vmatmul.mubr.bf16.gmra.mrb[0].mxu0 %v330
        %v370 = vpop.f32.mrb[0].mxu0
        %v371 = vadd.f32 0.0, %v370
        %v372 = vpop.f32.mrb[0].mxu0
        %v373 = vpop.f32.mrb[0].mxu0
        %v374 = vpop.f32.mrb[0].mxu0
        %375 = vdwg.mxu0
        %376 = vrot.lane.b32.xlu0 %v320, 4
        %v377 = vpop.permute.xlu0 %376
        %378 = vrot.lane.b32.xlu0 %v321, 4
        %v379 = vpop.permute.xlu0 %378
        %vm380 = vcmask 31744
        %v381 = vsel %vm380, %v377, %v379
        %v383 = vsel %vm328, %v309, 0
        %v386 = vsel %vm332, %v381, 0
        %388 = vmatprep.subr.bf16.mxu0 0
        %389 = vmatpush1.bf16.msra.mxu0 %v386
        %390 = vmatprep.subr.bf16.mxu0 0
        %391 = vmatpush1.bf16.msra.mxu0 0
        %392 = vmatprep.subr.bf16.mxu0 0
        %393 = vmatpush1.bf16.msra.mxu0 0
        %394 = vmatprep.subr.bf16.mxu0 0
        %395 = vmatpush1.bf16.msra.mxu0 0
        %396 = vmatprep.subr.bf16.mxu0 0
        %397 = vmatpush1.bf16.msra.mxu0 0
        %398 = vmatprep.subr.bf16.mxu0 0
        %399 = vmatpush1.bf16.msra.mxu0 0
        %400 = vmatprep.subr.bf16.mxu0 0
        %401 = vmatpush1.bf16.msra.mxu0 0
        %402 = vmatprep.subr.bf16.mxu0 0
        %403 = vmatpush1.bf16.msra.mxu0 0
        %404 = vmatprep.subr.bf16.mxu0 0
        %405 = vmatpush1.bf16.msra.mxu0 0
        %406 = vmatprep.subr.bf16.mxu0 0
        %407 = vmatpush1.bf16.msra.mxu0 0
        %408 = vmatprep.subr.bf16.mxu0 0
        %409 = vmatpush1.bf16.msra.mxu0 0
        %410 = vmatprep.subr.bf16.mxu0 0
        %411 = vmatpush1.bf16.msra.mxu0 0
        %412 = vmatprep.subr.bf16.mxu0 0
        %413 = vmatpush1.bf16.msra.mxu0 0
        %414 = vmatprep.subr.bf16.mxu0 0
        %415 = vmatpush1.bf16.msra.mxu0 0
        %416 = vmatprep.subr.bf16.mxu0 0
        %417 = vmatpush1.bf16.msra.mxu0 0
        %418 = vmatprep.subr.bf16.mxu0 0
        %419 = vmatpush1.bf16.msra.mxu0 0
        %420 = vmatprep.mubr.bf16.mxu0 0
        %421 = vmatmul.mubr.bf16.gmra.mrb[0].mxu0 %v383
        %v422 = vpop.f32.mrb[0].mxu0
        %v423 = vadd.f32 %v371, %v422
        %v424 = vpop.f32.mrb[0].mxu0
        %v425 = vpop.f32.mrb[0].mxu0
        %v426 = vpop.f32.mrb[0].mxu0
        %427 = vdwg.mxu0
        %s428 = scalar_lea.vmem %s1, 8
        %v429 = vld [vmem:[%s428] sm:$0xf]
        %v430 = vld [vmem:[#allocation2 + $0x2] sm:$0x3]
        %v432 = vsel %vm328, %v429, 0
        %v435 = vsel %vm332, %v430, 0
        %437 = vmatprep.subr.bf16.mxu0 0
        %438 = vmatpush1.bf16.msra.mxu0 %v435
        %439 = vmatprep.subr.bf16.mxu0 0
        %440 = vmatpush1.bf16.msra.mxu0 0
        %441 = vmatprep.subr.bf16.mxu0 0
        %442 = vmatpush1.bf16.msra.mxu0 0
        %443 = vmatprep.subr.bf16.mxu0 0
        %444 = vmatpush1.bf16.msra.mxu0 0
        %445 = vmatprep.subr.bf16.mxu0 0
        %446 = vmatpush1.bf16.msra.mxu0 0
        %447 = vmatprep.subr.bf16.mxu0 0
        %448 = vmatpush1.bf16.msra.mxu0 0
        %449 = vmatprep.subr.bf16.mxu0 0
        %450 = vmatpush1.bf16.msra.mxu0 0
        %451 = vmatprep.subr.bf16.mxu0 0
        %452 = vmatpush1.bf16.msra.mxu0 0
        %453 = vmatprep.subr.bf16.mxu0 0
        %454 = vmatpush1.bf16.msra.mxu0 0
        %455 = vmatprep.subr.bf16.mxu0 0
        %456 = vmatpush1.bf16.msra.mxu0 0
        %457 = vmatprep.subr.bf16.mxu0 0
        %458 = vmatpush1.bf16.msra.mxu0 0
        %459 = vmatprep.subr.bf16.mxu0 0
        %460 = vmatpush1.bf16.msra.mxu0 0
        %461 = vmatprep.subr.bf16.mxu0 0
        %462 = vmatpush1.bf16.msra.mxu0 0
        %463 = vmatprep.subr.bf16.mxu0 0
        %464 = vmatpush1.bf16.msra.mxu0 0
        %465 = vmatprep.subr.bf16.mxu0 0
        %466 = vmatpush1.bf16.msra.mxu0 0
        %467 = vmatprep.subr.bf16.mxu0 0
        %468 = vmatpush1.bf16.msra.mxu0 0
        %469 = vmatprep.mubr.bf16.mxu0 0
        %470 = vmatmul.mubr.bf16.gmra.mrb[0].mxu0 %v432
        %v471 = vpop.f32.mrb[0].mxu0
        %v472 = vadd.f32 0.0, %v471
        %v473 = vpop.f32.mrb[0].mxu0
        %v474 = vpop.f32.mrb[0].mxu0
        %v475 = vpop.f32.mrb[0].mxu0
        %476 = vdwg.mxu0
        %v477 = vadd.f32 %v423, %v472
        %v478 = vld [vmem:[%s2] sm:$0xff]
        %480 = vset.pattern.permute.xlu0 0
        %481 = vperm.xlu0 %480, %v478
        %v482 = vpop.permute.xlu0 %481
        %v484 = vadd.f32 %v477, %v482
        %v485 = vmax.f32 %v484, 0.0
        %v486 = vpack.c.bf16 %v485, %v485
        %vm487 = vcmask 125952
        %488 = vst.msk [vmem:[#allocation3 + $0x4] sm:$0xf] %vm487, %v486
        %v489 = vld [vmem:[%s3] sm:$0xf]
        %v490 = vld [vmem:[#allocation3] sm:$0xff]
        %s491 = scalar_lea.vmem %s3, 4
        %v492 = vld [vmem:[%s491] sm:$0xf]
        %v494 = vunpack.c.l.b16 %v490
        %v495 = vunpack.c.h.b16 %v490
        %v496 = vpack.c.b16 %v494, %v494
        %v497 = vpack.c.b16 %v495, %v495
        %498 = vrot.lane.b32.xlu0 %v496, 2
        %v499 = vpop.permute.xlu0 %498
        %500 = vrot.lane.b32.xlu0 %v497, 2
        %v501 = vpop.permute.xlu0 %500
        %v502 = vsel %vm326, %v499, %v501
        %vm503 = vcmask 64512
        %v505 = vsel %vm503, %v492, 0
        %vm507 = vcmask 1043456
        %v509 = vsel %vm507, %v502, 0
        %511 = vmatprep.subr.bf16.mxu0 0
        %512 = vmatpush1.bf16.msra.mxu0 %v509
        %513 = vmatprep.subr.bf16.mxu0 0
        %514 = vmatpush1.bf16.msra.mxu0 0
        %515 = vmatprep.subr.bf16.mxu0 0
        %516 = vmatpush1.bf16.msra.mxu0 0
        %517 = vmatprep.subr.bf16.mxu0 0
        %518 = vmatpush1.bf16.msra.mxu0 0
        %519 = vmatprep.subr.bf16.mxu0 0
        %520 = vmatpush1.bf16.msra.mxu0 0
        %521 = vmatprep.subr.bf16.mxu0 0
        %522 = vmatpush1.bf16.msra.mxu0 0
        %523 = vmatprep.subr.bf16.mxu0 0
        %524 = vmatpush1.bf16.msra.mxu0 0
        %525 = vmatprep.subr.bf16.mxu0 0
        %526 = vmatpush1.bf16.msra.mxu0 0
        %527 = vmatprep.subr.bf16.mxu0 0
        %528 = vmatpush1.bf16.msra.mxu0 0
        %529 = vmatprep.subr.bf16.mxu0 0
        %530 = vmatpush1.bf16.msra.mxu0 0
        %531 = vmatprep.subr.bf16.mxu0 0
        %532 = vmatpush1.bf16.msra.mxu0 0
        %533 = vmatprep.subr.bf16.mxu0 0
        %534 = vmatpush1.bf16.msra.mxu0 0
        %535 = vmatprep.subr.bf16.mxu0 0
        %536 = vmatpush1.bf16.msra.mxu0 0
        %537 = vmatprep.subr.bf16.mxu0 0
        %538 = vmatpush1.bf16.msra.mxu0 0
        %539 = vmatprep.subr.bf16.mxu0 0
        %540 = vmatpush1.bf16.msra.mxu0 0
        %541 = vmatprep.subr.bf16.mxu0 0
        %542 = vmatpush1.bf16.msra.mxu0 0
        %543 = vmatprep.mubr.bf16.mxu0 0
        %544 = vmatmul.mubr.bf16.gmra.mrb[0].mxu0 %v505
        %v545 = vpop.f32.mrb[0].mxu0
        %v546 = vadd.f32 0.0, %v545
        %v547 = vpop.f32.mrb[0].mxu0
        %v548 = vpop.f32.mrb[0].mxu0
        %v549 = vpop.f32.mrb[0].mxu0
        %550 = vdwg.mxu0
        %551 = vrot.lane.b32.xlu0 %v496, 4
        %v552 = vpop.permute.xlu0 %551
        %553 = vrot.lane.b32.xlu0 %v497, 4
        %v554 = vpop.permute.xlu0 %553
        %v555 = vsel %vm380, %v552, %v554
        %v557 = vsel %vm503, %v489, 0
        %v560 = vsel %vm507, %v555, 0
        %562 = vmatprep.subr.bf16.mxu0 0
        %563 = vmatpush1.bf16.msra.mxu0 %v560
        %564 = vmatprep.subr.bf16.mxu0 0
        %565 = vmatpush1.bf16.msra.mxu0 0
        %566 = vmatprep.subr.bf16.mxu0 0
        %567 = vmatpush1.bf16.msra.mxu0 0
        %568 = vmatprep.subr.bf16.mxu0 0
        %569 = vmatpush1.bf16.msra.mxu0 0
        %570 = vmatprep.subr.bf16.mxu0 0
        %571 = vmatpush1.bf16.msra.mxu0 0
        %572 = vmatprep.subr.bf16.mxu0 0
        %573 = vmatpush1.bf16.msra.mxu0 0
        %574 = vmatprep.subr.bf16.mxu0 0
        %575 = vmatpush1.bf16.msra.mxu0 0
        %576 = vmatprep.subr.bf16.mxu0 0
        %577 = vmatpush1.bf16.msra.mxu0 0
        %578 = vmatprep.subr.bf16.mxu0 0
        %579 = vmatpush1.bf16.msra.mxu0 0
        %580 = vmatprep.subr.bf16.mxu0 0
        %581 = vmatpush1.bf16.msra.mxu0 0
        %582 = vmatprep.subr.bf16.mxu0 0
        %583 = vmatpush1.bf16.msra.mxu0 0
        %584 = vmatprep.subr.bf16.mxu0 0
        %585 = vmatpush1.bf16.msra.mxu0 0
        %586 = vmatprep.subr.bf16.mxu0 0
        %587 = vmatpush1.bf16.msra.mxu0 0
        %588 = vmatprep.subr.bf16.mxu0 0
        %589 = vmatpush1.bf16.msra.mxu0 0
        %590 = vmatprep.subr.bf16.mxu0 0
        %591 = vmatpush1.bf16.msra.mxu0 0
        %592 = vmatprep.subr.bf16.mxu0 0
        %593 = vmatpush1.bf16.msra.mxu0 0
        %594 = vmatprep.mubr.bf16.mxu0 0
        %595 = vmatmul.mubr.bf16.gmra.mrb[0].mxu0 %v557
        %v596 = vpop.f32.mrb[0].mxu0
        %v597 = vadd.f32 %v546, %v596
        %v598 = vpop.f32.mrb[0].mxu0
        %v599 = vpop.f32.mrb[0].mxu0
        %v600 = vpop.f32.mrb[0].mxu0
        %601 = vdwg.mxu0
        %s602 = scalar_lea.vmem %s3, 8
        %v603 = vld [vmem:[%s602] sm:$0xf]
        %v604 = vld [vmem:[#allocation3 + $0x4] sm:$0xf]
        %v606 = vsel %vm503, %v603, 0
        %v609 = vsel %vm507, %v604, 0
        %611 = vmatprep.subr.bf16.mxu0 0
        %612 = vmatpush1.bf16.msra.mxu0 %v609
        %613 = vmatprep.subr.bf16.mxu0 0
        %614 = vmatpush1.bf16.msra.mxu0 0
        %615 = vmatprep.subr.bf16.mxu0 0
        %616 = vmatpush1.bf16.msra.mxu0 0
        %617 = vmatprep.subr.bf16.mxu0 0
        %618 = vmatpush1.bf16.msra.mxu0 0
        %619 = vmatprep.subr.bf16.mxu0 0
        %620 = vmatpush1.bf16.msra.mxu0 0
        %621 = vmatprep.subr.bf16.mxu0 0
        %622 = vmatpush1.bf16.msra.mxu0 0
        %623 = vmatprep.subr.bf16.mxu0 0
        %624 = vmatpush1.bf16.msra.mxu0 0
        %625 = vmatprep.subr.bf16.mxu0 0
        %626 = vmatpush1.bf16.msra.mxu0 0
        %627 = vmatprep.subr.bf16.mxu0 0
        %628 = vmatpush1.bf16.msra.mxu0 0
        %629 = vmatprep.subr.bf16.mxu0 0
        %630 = vmatpush1.bf16.msra.mxu0 0
        %631 = vmatprep.subr.bf16.mxu0 0
        %632 = vmatpush1.bf16.msra.mxu0 0
        %633 = vmatprep.subr.bf16.mxu0 0
        %634 = vmatpush1.bf16.msra.mxu0 0
        %635 = vmatprep.subr.bf16.mxu0 0
        %636 = vmatpush1.bf16.msra.mxu0 0
        %637 = vmatprep.subr.bf16.mxu0 0
        %638 = vmatpush1.bf16.msra.mxu0 0
        %639 = vmatprep.subr.bf16.mxu0 0
        %640 = vmatpush1.bf16.msra.mxu0 0
        %641 = vmatprep.subr.bf16.mxu0 0
        %642 = vmatpush1.bf16.msra.mxu0 0
        %643 = vmatprep.mubr.bf16.mxu0 0
        %644 = vmatmul.mubr.bf16.gmra.mrb[0].mxu0 %v606
        %v645 = vpop.f32.mrb[0].mxu0
        %v646 = vadd.f32 0.0, %v645
        %v647 = vpop.f32.mrb[0].mxu0
        %v648 = vpop.f32.mrb[0].mxu0
        %v649 = vpop.f32.mrb[0].mxu0
        %650 = vdwg.mxu0
        %v651 = vadd.f32 %v597, %v646
        %v652 = vld [vmem:[%s4] sm:$0xff]
        %654 = vset.pattern.permute.xlu0 0
        %655 = vperm.xlu0 %654, %v652
        %v656 = vpop.permute.xlu0 %655
        %v658 = vadd.f32 %v651, %v656
        %v659 = vmax.f32 %v658, 0.0
        %v660 = vld [vmem:[%s5] sm:$0xf]
        %v661 = vld [vmem:[%s298] sm:$0x3]
        %v662 = vld [vmem:[%s6] sm:$0xff]
        %664 = vset.pattern.permute.xlu0 0
        %665 = vperm.xlu0 %664, %v662
        %v666 = vpop.permute.xlu0 %665
        %v669 = vsel %vm328, %v660, 0
        %v672 = vsel %vm332, %v661, 0
        %674 = vmatprep.subr.bf16.mxu0 0
        %675 = vmatpush1.bf16.msra.mxu0 %v672
        %676 = vmatprep.subr.bf16.mxu0 0
        %677 = vmatpush1.bf16.msra.mxu0 0
        %678 = vmatprep.subr.bf16.mxu0 0
        %679 = vmatpush1.bf16.msra.mxu0 0
        %680 = vmatprep.subr.bf16.mxu0 0
        %681 = vmatpush1.bf16.msra.mxu0 0
        %682 = vmatprep.subr.bf16.mxu0 0
        %683 = vmatpush1.bf16.msra.mxu0 0
        %684 = vmatprep.subr.bf16.mxu0 0
        %685 = vmatpush1.bf16.msra.mxu0 0
        %686 = vmatprep.subr.bf16.mxu0 0
        %687 = vmatpush1.bf16.msra.mxu0 0
        %688 = vmatprep.subr.bf16.mxu0 0
        %689 = vmatpush1.bf16.msra.mxu0 0
        %690 = vmatprep.subr.bf16.mxu0 0
        %691 = vmatpush1.bf16.msra.mxu0 0
        %692 = vmatprep.subr.bf16.mxu0 0
        %693 = vmatpush1.bf16.msra.mxu0 0
        %694 = vmatprep.subr.bf16.mxu0 0
        %695 = vmatpush1.bf16.msra.mxu0 0
        %696 = vmatprep.subr.bf16.mxu0 0
        %697 = vmatpush1.bf16.msra.mxu0 0
        %698 = vmatprep.subr.bf16.mxu0 0
        %699 = vmatpush1.bf16.msra.mxu0 0
        %700 = vmatprep.subr.bf16.mxu0 0
        %701 = vmatpush1.bf16.msra.mxu0 0
        %702 = vmatprep.subr.bf16.mxu0 0
        %703 = vmatpush1.bf16.msra.mxu0 0
        %704 = vmatprep.subr.bf16.mxu0 0
        %705 = vmatpush1.bf16.msra.mxu0 0
        %706 = vmatprep.mubr.bf16.mxu0 0
        %707 = vmatmul.mubr.bf16.gmra.mrb[0].mxu0 %v669
        %v708 = vpop.f32.mrb[0].mxu0
        %v709 = vadd.f32 %v666, %v708
        %v710 = vpop.f32.mrb[0].mxu0
        %v711 = vpop.f32.mrb[0].mxu0
        %v712 = vpop.f32.mrb[0].mxu0
        %713 = vdwg.mxu0
        %v714 = vadd.f32 %v659, %v709
        %v715 = vmax.f32 %v714, 0.0
        %vm716 = vcmask 130048
        %717 = vst.msk [vmem:[%s291] sm:$0xff] %vm716, %v715
        %s718 = sand.u32 %s197, 1
        %s719 = scalar_lea.sflag [#allocation5], %s718
        %s720 = sand.u32 %s197, 1
        %s721 = smul.addr %s720, 8
        %s722 = scalar_lea.vmem [#allocation4], %s721
        // Predicated region
        $region53: #{tpu_custom_call.1} parent=47 // pred_check
          %p723 = pneg %p207
        $region54: #{tpu_custom_call.1} parent=47 // pred_check_branch
          %725 = sbr.rel (%p723) target = $region56
        $region55: #{tpu_custom_call.1} parent=47 // pred_region
          %s727 = ssub.s32 128, 128
          %728 = vsyncadd %s719, %s727
          %s729 = sadd.s32 %s26, %s25
          %s730 = smul.addr %s729, 128
          %s731 = scalar_lea.hbm %s7, %s730
          %s733 = sshll.u32 %s722, 4
          %s734 = int_to_ptr.vmem [resolvable:$true] %s733
          %736 = dma.vmem_to_hbm [thread:$0]  %s734, 128, %s731, %s719
        $region56: #{tpu_custom_call.1} parent=47 // pred_fallthru
          _
      $region48: #{tpu_custom_call.1} parent=5 // pred_fallthru
        _
      %p737 = scmp.le.s32.totalorder 2, %s16
      // Predicated region
      $region57: #{tpu_custom_call.1} parent=5 // pred_check
        %p738 = pneg %p737
      $region58: #{tpu_custom_call.1} parent=5 // pred_check_branch
        %740 = sbr.rel (%p738) target = $region60
      $region59: #{tpu_custom_call.1} parent=5 // pred_region
        %s741 = ssub.s32 %s16, 2
        // Predicated region
        $region61: #{tpu_custom_call.1} parent=59 // pred_check
          %p742 = pneg %p213
        $region62: #{tpu_custom_call.1} parent=59 // pred_check_branch
          %744 = sbr.rel (%p742) target = $region64
        $region63: #{tpu_custom_call.1} parent=59 // pred_region
          %s745 = sand.u32 %s198, 1
          %s746 = scalar_lea.sflag [#allocation5], %s745
          %s747 = sand.u32 %s198, 1
          %s748 = smul.addr %s747, 8
          %s749 = scalar_lea.vmem [#allocation4], %s748
          %750 = dma.done %s746, 128
        $region64: #{tpu_custom_call.1} parent=59 // pred_fallthru
          _
      $region60: #{tpu_custom_call.1} parent=5 // pred_fallthru
        _
    $region6: #{tpu_custom_call.1} parent=1 // loop_footer
      %s20 = sadd.s32 1, %s16
    $region7: #{tpu_custom_call.1} parent=1 // loop_footer_branch
      %15 = sbr.rel target = $region3
    $region8: #{tpu_custom_call.1} parent=1 // loop_exit
      _
    %751 = vsyncpa [#allocation5], 1
    %s752 = scalar_lea.sflag [#allocation5], 1
    %753 = vsyncpa %s752, 1

// kernel: tpu_custom_call.1
$region0: #{tpu_custom_call.1}
  #allocation0 [shape = 'u32[]', space=smem, size = 0x4, offset = 0x4, fixed_abs, tag = 'smem constant byte address 0x4 - core index']
  #allocation1 [shape = 'u32[144,128]{1,0:T(1,128)}', space=vmem, size = 0x12000, scoped, tag = 'internal scratch']
  #allocation2 [shape = 'bf16[1,4,144]{2,1,0:T(4,128)(2,1)}', space=vmem, size = 0x800, scoped, tag = 'scratch operand']
  #allocation3 [shape = 'bf16[1,8,144]{2,1,0:T(8,128)(2,1)}', space=vmem, size = 0x1000, scoped, tag = 'scratch operand']
  %s0 = inlined_call_operand.vmem [shape: bf16[2,4,16], index: 0, kind: input, shape index: {}]
  %s1 = inlined_call_operand.vmem [shape: bf16[3,8,4], index: 1, kind: input, shape index: {}]
  %s2 = inlined_call_operand.vmem [shape: f32[8,1], index: 2, kind: input, shape index: {}]
  %s3 = inlined_call_operand.vmem [shape: bf16[3,8,8], index: 3, kind: input, shape index: {}]
  %s4 = inlined_call_operand.vmem [shape: f32[8,1], index: 4, kind: input, shape index: {}]
  %s5 = inlined_call_operand.vmem [shape: bf16[8,4], index: 5, kind: input, shape index: {}]
  %s6 = inlined_call_operand.vmem [shape: f32[8,1], index: 6, kind: input, shape index: {}]
  %s7 = inlined_call_operand.hbm [shape: f32[2,8,16], index: 7, kind: output, shape index: {}]
  %s8 = sld [smem:[#allocation0]]
  $region65: #{tpu_custom_call.1} parent=0
    _
  %s10 = ssub.s32 1, %s8
  %s11 = scalar_select 0, %s10, %s8
  $region1: #{tpu_custom_call.1} parent=0
    #allocation4 [shape = 'u8[8192]{0}', space=vmem, size = 0x2000, scoped, tag = 'output window, operand 0']
    #allocation5 [shape = 's32[2]{0}', space=sflag, size = 0x8, scoped, tag = 'scoped memory for tpu_custom_call.1']
    %12 = vsyncpa [#allocation5], 0
    %s13 = scalar_lea.sflag [#allocation5], 1
    %14 = vsyncpa %s13, 0
    loop: start=0, step=1, limit=4
    $region2: #{tpu_custom_call.1} parent=1 // loop_pre_header
      _
    $region3: #{tpu_custom_call.1} parent=1 // loop_header
      %s16 = sphi 0, %s20
      %p17 = scmp.ge.s32.totalorder %s16, 4
      %s23 = sphi 0, %s35
      %s24 = sphi 0, %s31
      %s25 = sphi 0, %s23
      %s26 = sphi 0, %s24
      %s27 = sphi 0, %s25
      %s28 = sphi 0, %s26
      %s40 = sphi 0, %s42
      %s43 = sphi 0, %s40
      %s44 = sphi 0, %s43
      %s60 = sphi 0, %s44
      %s64 = sphi 0, %s64
      %s66 = sphi 0, %s64
      %s67 = sphi 0, %s66
      %s81 = sphi 0, %s67
      %s85 = sphi 0, %s85
      %s87 = sphi 0, %s85
      %s88 = sphi 0, %s87
      %s102 = sphi 0, %s88
      %s106 = sphi 0, %s106
      %s108 = sphi 0, %s106
      %s109 = sphi 0, %s108
      %s123 = sphi 0, %s109
      %s127 = sphi 0, %s127
      %s129 = sphi 0, %s127
      %s130 = sphi 0, %s129
      %s144 = sphi 0, %s130
      %s148 = sphi 0, %s148
      %s150 = sphi 0, %s148
      %s151 = sphi 0, %s150
      %s165 = sphi 0, %s151
      %s169 = sphi 0, %s169
      %s171 = sphi 0, %s169
      %s172 = sphi 0, %s171
      %s186 = sphi 0, %s172
      %s194 = sphi 0, %s196
      %s197 = sphi 0, %s194
      %s198 = sphi 0, %s197
      %s214 = sphi 0, %s198
    $region4: #{tpu_custom_call.1} parent=1 // loop_header_branch
      %19 = sbr.rel (%p17) target = $region8
    $region5: #{tpu_custom_call.1} parent=1 // loop_body
      %s21 = ssub.s32 %s16, 1
      %s22 = ssub.s32 %s16, 2
      %s29 = sadd.s32 1, %s24
      %p30 = scmp.ge.s32.totalorder %s29, 1
      %s31 = scalar_select %p30, 0, %s29
      %s32 = sadd.s32 1, %s23
      %s33 = scalar_select %p30, %s32, %s23
      %p34 = scmp.ge.s32.totalorder %s33, 2
      %s35 = scalar_select %p34, 0, %s33
      %s36 = ssub.s32 %s23, %s35
      %s37 = ssub.s32 %s24, %s31
      %s38 = sor.u32 %s36, %s37
      %p39 = scmp.eq.s32.totalorder %s38, 0
      %s41 = sadd.s32 %s40, 1
      %s42 = scalar_select %p39, %s40, %s41
      %p45 = pneg %p39
      %p46 = scmp.eq.s32.totalorder %s16, 1
      %p47 = por %p45, %p46
      %p48 = scmp.ne.s32.totalorder %s40, %s43
      %p49 = scmp.eq.s32.totalorder %s16, 0
      %p50 = por %p48, %p49
      %p51 = scmp.ne.s32.totalorder %s40, %s43
      %p52 = scmp.eq.s32.totalorder %s21, 1
      %p53 = por %p51, %p52
      %p54 = scmp.ne.s32.totalorder %s43, %s44
      %p55 = scmp.eq.s32.totalorder %s21, 0
      %p56 = por %p54, %p55
      %p57 = scmp.ne.s32.totalorder %s43, %s44
      %p58 = scmp.eq.s32.totalorder %s22, 1
      %p59 = por %p57, %p58
      %p61 = scmp.ne.s32.totalorder %s44, %s60
      %p62 = scmp.eq.s32.totalorder %s22, 0
      %p63 = por %p61, %p62
      %s65 = sadd.s32 %s64, 1
      %p68 = scmp.eq.s32.totalorder %s16, 1
      %p69 = scmp.ne.s32.totalorder %s64, %s66
      %p70 = scmp.eq.s32.totalorder %s16, 0
      %p71 = por %p69, %p70
      %p72 = scmp.ne.s32.totalorder %s64, %s66
      %p73 = scmp.eq.s32.totalorder %s21, 1
      %p74 = por %p72, %p73
      %p75 = scmp.ne.s32.totalorder %s66, %s67
      %p76 = scmp.eq.s32.totalorder %s21, 0
      %p77 = por %p75, %p76
      %p78 = scmp.ne.s32.totalorder %s66, %s67
      %p79 = scmp.eq.s32.totalorder %s22, 1
      %p80 = por %p78, %p79
      %p82 = scmp.ne.s32.totalorder %s67, %s81
      %p83 = scmp.eq.s32.totalorder %s22, 0
      %p84 = por %p82, %p83
      %s86 = sadd.s32 %s85, 1
      %p89 = scmp.eq.s32.totalorder %s16, 1
      %p90 = scmp.ne.s32.totalorder %s85, %s87
      %p91 = scmp.eq.s32.totalorder %s16, 0
      %p92 = por %p90, %p91
      %p93 = scmp.ne.s32.totalorder %s85, %s87
      %p94 = scmp.eq.s32.totalorder %s21, 1
      %p95 = por %p93, %p94
      %p96 = scmp.ne.s32.totalorder %s87, %s88
      %p97 = scmp.eq.s32.totalorder %s21, 0
      %p98 = por %p96, %p97
      %p99 = scmp.ne.s32.totalorder %s87, %s88
      %p100 = scmp.eq.s32.totalorder %s22, 1
      %p101 = por %p99, %p100
      %p103 = scmp.ne.s32.totalorder %s88, %s102
      %p104 = scmp.eq.s32.totalorder %s22, 0
      %p105 = por %p103, %p104
      %s107 = sadd.s32 %s106, 1
      %p110 = scmp.eq.s32.totalorder %s16, 1
      %p111 = scmp.ne.s32.totalorder %s106, %s108
      %p112 = scmp.eq.s32.totalorder %s16, 0
      %p113 = por %p111, %p112
      %p114 = scmp.ne.s32.totalorder %s106, %s108
      %p115 = scmp.eq.s32.totalorder %s21, 1
      %p116 = por %p114, %p115
      %p117 = scmp.ne.s32.totalorder %s108, %s109
      %p118 = scmp.eq.s32.totalorder %s21, 0
      %p119 = por %p117, %p118
      %p120 = scmp.ne.s32.totalorder %s108, %s109
      %p121 = scmp.eq.s32.totalorder %s22, 1
      %p122 = por %p120, %p121
      %p124 = scmp.ne.s32.totalorder %s109, %s123
      %p125 = scmp.eq.s32.totalorder %s22, 0
      %p126 = por %p124, %p125
      %s128 = sadd.s32 %s127, 1
      %p131 = scmp.eq.s32.totalorder %s16, 1
      %p132 = scmp.ne.s32.totalorder %s127, %s129
      %p133 = scmp.eq.s32.totalorder %s16, 0
      %p134 = por %p132, %p133
      %p135 = scmp.ne.s32.totalorder %s127, %s129
      %p136 = scmp.eq.s32.totalorder %s21, 1
      %p137 = por %p135, %p136
      %p138 = scmp.ne.s32.totalorder %s129, %s130
      %p139 = scmp.eq.s32.totalorder %s21, 0
      %p140 = por %p138, %p139
      %p141 = scmp.ne.s32.totalorder %s129, %s130
      %p142 = scmp.eq.s32.totalorder %s22, 1
      %p143 = por %p141, %p142
      %p145 = scmp.ne.s32.totalorder %s130, %s144
      %p146 = scmp.eq.s32.totalorder %s22, 0
      %p147 = por %p145, %p146
      %s149 = sadd.s32 %s148, 1
      %p152 = scmp.eq.s32.totalorder %s16, 1
      %p153 = scmp.ne.s32.totalorder %s148, %s150
      %p154 = scmp.eq.s32.totalorder %s16, 0
      %p155 = por %p153, %p154
      %p156 = scmp.ne.s32.totalorder %s148, %s150
      %p157 = scmp.eq.s32.totalorder %s21, 1
      %p158 = por %p156, %p157
      %p159 = scmp.ne.s32.totalorder %s150, %s151
      %p160 = scmp.eq.s32.totalorder %s21, 0
      %p161 = por %p159, %p160
      %p162 = scmp.ne.s32.totalorder %s150, %s151
      %p163 = scmp.eq.s32.totalorder %s22, 1
      %p164 = por %p162, %p163
      %p166 = scmp.ne.s32.totalorder %s151, %s165
      %p167 = scmp.eq.s32.totalorder %s22, 0
      %p168 = por %p166, %p167
      %s170 = sadd.s32 %s169, 1
      %p173 = scmp.eq.s32.totalorder %s16, 1
      %p174 = scmp.ne.s32.totalorder %s169, %s171
      %p175 = scmp.eq.s32.totalorder %s16, 0
      %p176 = por %p174, %p175
      %p177 = scmp.ne.s32.totalorder %s169, %s171
      %p178 = scmp.eq.s32.totalorder %s21, 1
      %p179 = por %p177, %p178
      %p180 = scmp.ne.s32.totalorder %s171, %s172
      %p181 = scmp.eq.s32.totalorder %s21, 0
      %p182 = por %p180, %p181
      %p183 = scmp.ne.s32.totalorder %s171, %s172
      %p184 = scmp.eq.s32.totalorder %s22, 1
      %p185 = por %p183, %p184
      %p187 = scmp.ne.s32.totalorder %s172, %s186
      %p188 = scmp.eq.s32.totalorder %s22, 0
      %p189 = por %p187, %p188
      %s190 = ssub.s32 %s23, %s35
      %s191 = ssub.s32 %s24, %s31
      %s192 = sor.u32 %s190, %s191
      %p193 = scmp.eq.s32.totalorder %s192, 0
      %s195 = sadd.s32 %s194, 1
      %s196 = scalar_select %p193, %s194, %s195
      %p199 = pneg %p193
      %p200 = scmp.eq.s32.totalorder %s16, 1
      %p201 = por %p199, %p200
      %p202 = scmp.ne.s32.totalorder %s194, %s197
      %p203 = scmp.eq.s32.totalorder %s16, 0
      %p204 = por %p202, %p203
      %p205 = scmp.ne.s32.totalorder %s194, %s197
      %p206 = scmp.eq.s32.totalorder %s21, 1
      %p207 = por %p205, %p206
      %p208 = scmp.ne.s32.totalorder %s197, %s198
      %p209 = scmp.eq.s32.totalorder %s21, 0
      %p210 = por %p208, %p209
      %p211 = scmp.ne.s32.totalorder %s197, %s198
      %p212 = scmp.eq.s32.totalorder %s22, 1
      %p213 = por %p211, %p212
      %p215 = scmp.ne.s32.totalorder %s198, %s214
      %p216 = scmp.eq.s32.totalorder %s22, 0
      %p217 = por %p215, %p216
      %p218 = scmp.le.s32.totalorder 1, %s16
      %p219 = scmp.lt.s32.totalorder %s16, 3
      %p220 = pnand %p218, %p219
      %p221 = pneg %p220
      // Predicated region
      $region9: #{tpu_custom_call.1} parent=5 // pred_check
        _
      $region10: #{tpu_custom_call.1} parent=5 // pred_check_branch
        %223 = sbr.rel (%p220) target = $region12
      $region11: #{tpu_custom_call.1} parent=5 // pred_region
        %s224 = ssub.s32 %s16, 1
        // Predicated region
        $region13: #{tpu_custom_call.1} parent=11 // pred_check
          %p225 = pneg %p77
        $region14: #{tpu_custom_call.1} parent=11 // pred_check_branch
          %227 = sbr.rel (%p225) target = $region16
        $region15: #{tpu_custom_call.1} parent=11 // pred_region
          _
        $region16: #{tpu_custom_call.1} parent=11 // pred_fallthru
          _
        // Predicated region
        $region17: #{tpu_custom_call.1} parent=11 // pred_check
          %p228 = pneg %p98
        $region18: #{tpu_custom_call.1} parent=11 // pred_check_branch
          %230 = sbr.rel (%p228) target = $region20
        $region19: #{tpu_custom_call.1} parent=11 // pred_region
          _
        $region20: #{tpu_custom_call.1} parent=11 // pred_fallthru
          _
        // Predicated region
        $region21: #{tpu_custom_call.1} parent=11 // pred_check
          %p231 = pneg %p119
        $region22: #{tpu_custom_call.1} parent=11 // pred_check_branch
          %233 = sbr.rel (%p231) target = $region24
        $region23: #{tpu_custom_call.1} parent=11 // pred_region
          _
        $region24: #{tpu_custom_call.1} parent=11 // pred_fallthru
          _
        // Predicated region
        $region25: #{tpu_custom_call.1} parent=11 // pred_check
          %p234 = pneg %p140
        $region26: #{tpu_custom_call.1} parent=11 // pred_check_branch
          %236 = sbr.rel (%p234) target = $region28
        $region27: #{tpu_custom_call.1} parent=11 // pred_region
          _
        $region28: #{tpu_custom_call.1} parent=11 // pred_fallthru
          _
        // Predicated region
        $region29: #{tpu_custom_call.1} parent=11 // pred_check
          %p237 = pneg %p161
        $region30: #{tpu_custom_call.1} parent=11 // pred_check_branch
          %239 = sbr.rel (%p237) target = $region32
        $region31: #{tpu_custom_call.1} parent=11 // pred_region
          _
        $region32: #{tpu_custom_call.1} parent=11 // pred_fallthru
          _
        // Predicated region
        $region33: #{tpu_custom_call.1} parent=11 // pred_check
          %p240 = pneg %p182
        $region34: #{tpu_custom_call.1} parent=11 // pred_check_branch
          %242 = sbr.rel (%p240) target = $region36
        $region35: #{tpu_custom_call.1} parent=11 // pred_region
          _
        $region36: #{tpu_custom_call.1} parent=11 // pred_fallthru
          _
      $region12: #{tpu_custom_call.1} parent=5 // pred_fallthru
        _
      %p243 = scmp.lt.s32.totalorder %s16, 2
      // Predicated region
      $region37: #{tpu_custom_call.1} parent=5 // pred_check
        %p244 = pneg %p243
      $region38: #{tpu_custom_call.1} parent=5 // pred_check_branch
        %246 = sbr.rel (%p244) target = $region40
      $region39: #{tpu_custom_call.1} parent=5 // pred_region
        // Predicated region
        $region41: #{tpu_custom_call.1} parent=39 // pred_check
          %p247 = pneg %p50
        $region42: #{tpu_custom_call.1} parent=39 // pred_check_branch
          %249 = sbr.rel (%p247) target = $region44
        $region43: #{tpu_custom_call.1} parent=39 // pred_region
          %p250 = scmp.lt.s32.totalorder %s23, 1
          %s251 = scalar_select %p250, %s23, 1
          %p252 = scmp.lt.s32.totalorder %s24, 0
          %s253 = scalar_select %p252, %s24, 0
          %s254 = sadd.s32 %s253, %s251
          %s255 = smul.addr %s254, 2
          %s256 = scalar_lea.vmem %s0, %s255
        $region44: #{tpu_custom_call.1} parent=39 // pred_fallthru
          _
      $region40: #{tpu_custom_call.1} parent=5 // pred_fallthru
        _
      %p257 = scmp.le.s32.totalorder 1, %s16
      %p258 = scmp.lt.s32.totalorder %s16, 3
      %p259 = pnand %p257, %p258
      %p260 = pneg %p259
      // Predicated region
      $region45: #{tpu_custom_call.1} parent=5 // pred_check
        _
      $region46: #{tpu_custom_call.1} parent=5 // pred_check_branch
        %262 = sbr.rel (%p259) target = $region48
      $region47: #{tpu_custom_call.1} parent=5 // pred_region
        %s263 = ssub.s32 %s16, 1
        %p264 = scmp.lt.s32.totalorder %s25, 1
        %s265 = scalar_select %p264, %s25, 1
        %p266 = scmp.lt.s32.totalorder %s26, 0
        %s267 = scalar_select %p266, %s26, 0
        %s268 = sadd.s32 %s267, %s265
        %s269 = smul.addr %s268, 2
        %s270 = scalar_lea.vmem %s0, %s269
        %p271 = pneg %p56
        %p272 = pneg %p53
        %p273 = pneg %p77
        %p274 = pneg %p74
        %p275 = pneg %p98
        %p276 = pneg %p95
        %p277 = pneg %p119
        %p278 = pneg %p116
        %p279 = pneg %p140
        %p280 = pneg %p137
        %p281 = pneg %p161
        %p282 = pneg %p158
        %p283 = pneg %p182
        %p284 = pneg %p179
        %p285 = pneg %p210
        %p286 = pneg %p207
        %s287 = sand.u32 %s197, 1
        %s288 = scalar_lea.sflag [#allocation5], %s287
        %s289 = sand.u32 %s197, 1
        %s290 = smul.addr %s289, 8
        %s291 = scalar_lea.vmem [#allocation4], %s290
        %p292 = scmp.lt.s32.totalorder %s25, 1
        %s293 = scalar_select %p292, %s25, 1
        %p294 = scmp.lt.s32.totalorder %s26, 0
        %s295 = scalar_select %p294, %s26, 0
        %s296 = sadd.s32 %s295, %s293
        %s297 = smul.addr %s296, 2
        %s298 = scalar_lea.vmem %s0, %s297
        %p300 = scmp.eq.s32.totalorder %s26, 0
        // Predicated region
        $region49: #{tpu_custom_call.1} parent=47 // pred_check
          %p301 = pneg %p300
        $region50: #{tpu_custom_call.1} parent=47 // pred_check_branch
          %303 = sbr.rel (%p301) target = $region52
        $region51: #{tpu_custom_call.1} parent=47 // pred_region
          %304 = vst [vmem:[#allocation2] sm:$0x3] 0
          %305 = vst [vmem:[#allocation3] sm:$0xf] 0
        $region52: #{tpu_custom_call.1} parent=47 // pred_fallthru
          _
        %v306 = vld [vmem:[%s298] sm:$0x3]
        %vm307 = vcmask 123904
        %308 = vst.msk [vmem:[#allocation2 + $0x2] sm:$0x3] %vm307, %v306
        %v309 = vld [vmem:[%s1] sm:$0xf]
        %v310 = vld [vmem:[#allocation2] sm:$0xf]
        %s311 = scalar_lea.vmem %s1, 4
        %v312 = vld [vmem:[%s311] sm:$0xf]
        %v315 = vunpack.c.l.s4 1983009808
        %v316 = vunpack.c.0.s8 %v315
        %v317 = vlaneseq
        %v318 = vshrl.u32 %v317, 7
        %v319 = vsub.s32 %v316, %v318
        %v320 = vrot.slane %v310, %v319
        %v321 = vcombine.high %v320, %v320
        %322 = vrot.lane.b32.xlu0 %v320, 2
        %v323 = vpop.permute.xlu0 %322
        %324 = vrot.lane.b32.xlu0 %v321, 2
        %v325 = vpop.permute.xlu0 %324
        %vm326 = vcmask 15360
        %v327 = vsel %vm326, %v323, %v325
        %vm328 = vcmask 31744
        %v330 = vsel %vm328, %v312, 0
        %vm332 = vcmask 1041408
        %v334 = vsel %vm332, %v327, 0
        %336 = vmatprep.subr.bf16.mxu0 0
        %337 = vmatpush1.bf16.msra.mxu0 %v334
        %338 = vmatprep.subr.bf16.mxu0 0
        %339 = vmatpush1.bf16.msra.mxu0 0
        %340 = vmatprep.subr.bf16.mxu0 0
        %341 = vmatpush1.bf16.msra.mxu0 0
        %342 = vmatprep.subr.bf16.mxu0 0
        %343 = vmatpush1.bf16.msra.mxu0 0
        %344 = vmatprep.subr.bf16.mxu0 0
        %345 = vmatpush1.bf16.msra.mxu0 0
        %346 = vmatprep.subr.bf16.mxu0 0
        %347 = vmatpush1.bf16.msra.mxu0 0
        %348 = vmatprep.subr.bf16.mxu0 0
        %349 = vmatpush1.bf16.msra.mxu0 0
        %350 = vmatprep.subr.bf16.mxu0 0
        %351 = vmatpush1.bf16.msra.mxu0 0
        %352 = vmatprep.subr.bf16.mxu0 0
        %353 = vmatpush1.bf16.msra.mxu0 0
        %354 = vmatprep.subr.bf16.mxu0 0
        %355 = vmatpush1.bf16.msra.mxu0 0
        %356 = vmatprep.subr.bf16.mxu0 0
        %357 = vmatpush1.bf16.msra.mxu0 0
        %358 = vmatprep.subr.bf16.mxu0 0
        %359 = vmatpush1.bf16.msra.mxu0 0
        %360 = vmatprep.subr.bf16.mxu0 0
        %361 = vmatpush1.bf16.msra.mxu0 0
        %362 = vmatprep.subr.bf16.mxu0 0
        %363 = vmatpush1.bf16.msra.mxu0 0
        %364 = vmatprep.subr.bf16.mxu0 0
        %365 = vmatpush1.bf16.msra.mxu0 0
        %366 = vmatprep.subr.bf16.mxu0 0
        %367 = vmatpush1.bf16.msra.mxu0 0
        %368 = vmatprep.mubr.bf16.mxu0 0
        %369 = vmatmul.mubr.bf16.gmra.mrb[0].mxu0 %v330
        %v370 = vpop.f32.mrb[0].mxu0
        %v371 = vadd.f32 0.0, %v370
        %v372 = vpop.f32.mrb[0].mxu0
        %v373 = vpop.f32.mrb[0].mxu0
        %v374 = vpop.f32.mrb[0].mxu0
        %375 = vdwg.mxu0
        %376 = vrot.lane.b32.xlu0 %v320, 4
        %v377 = vpop.permute.xlu0 %376
        %378 = vrot.lane.b32.xlu0 %v321, 4
        %v379 = vpop.permute.xlu0 %378
        %vm380 = vcmask 31744
        %v381 = vsel %vm380, %v377, %v379
        %v383 = vsel %vm328, %v309, 0
        %v386 = vsel %vm332, %v381, 0
        %388 = vmatprep.subr.bf16.mxu0 0
        %389 = vmatpush1.bf16.msra.mxu0 %v386
        %390 = vmatprep.subr.bf16.mxu0 0
        %391 = vmatpush1.bf16.msra.mxu0 0
        %392 = vmatprep.subr.bf16.mxu0 0
        %393 = vmatpush1.bf16.msra.mxu0 0
        %394 = vmatprep.subr.bf16.mxu0 0
        %395 = vmatpush1.bf16.msra.mxu0 0
        %396 = vmatprep.subr.bf16.mxu0 0
        %397 = vmatpush1.bf16.msra.mxu0 0
        %398 = vmatprep.subr.bf16.mxu0 0
        %399 = vmatpush1.bf16.msra.mxu0 0
        %400 = vmatprep.subr.bf16.mxu0 0
        %401 = vmatpush1.bf16.msra.mxu0 0
        %402 = vmatprep.subr.bf16.mxu0 0
        %403 = vmatpush1.bf16.msra.mxu0 0
        %404 = vmatprep.subr.bf16.mxu0 0
        %405 = vmatpush1.bf16.msra.mxu0 0
        %406 = vmatprep.subr.bf16.mxu0 0
        %407 = vmatpush1.bf16.msra.mxu0 0
        %408 = vmatprep.subr.bf16.mxu0 0
        %409 = vmatpush1.bf16.msra.mxu0 0
        %410 = vmatprep.subr.bf16.mxu0 0
        %411 = vmatpush1.bf16.msra.mxu0 0
        %412 = vmatprep.subr.bf16.mxu0 0
        %413 = vmatpush1.bf16.msra.mxu0 0
        %414 = vmatprep.subr.bf16.mxu0 0
        %415 = vmatpush1.bf16.msra.mxu0 0
        %416 = vmatprep.subr.bf16.mxu0 0
        %417 = vmatpush1.bf16.msra.mxu0 0
        %418 = vmatprep.subr.bf16.mxu0 0
        %419 = vmatpush1.bf16.msra.mxu0 0
        %420 = vmatprep.mubr.bf16.mxu0 0
        %421 = vmatmul.mubr.bf16.gmra.mrb[0].mxu0 %v383
        %v422 = vpop.f32.mrb[0].mxu0
        %v423 = vadd.f32 %v371, %v422
        %v424 = vpop.f32.mrb[0].mxu0
        %v425 = vpop.f32.mrb[0].mxu0
        %v426 = vpop.f32.mrb[0].mxu0
        %427 = vdwg.mxu0
        %s428 = scalar_lea.vmem %s1, 8
        %v429 = vld [vmem:[%s428] sm:$0xf]
        %v430 = vld [vmem:[#allocation2 + $0x2] sm:$0x3]
        %v432 = vsel %vm328, %v429, 0
        %v435 = vsel %vm332, %v430, 0
        %437 = vmatprep.subr.bf16.mxu0 0
        %438 = vmatpush1.bf16.msra.mxu0 %v435
        %439 = vmatprep.subr.bf16.mxu0 0
        %440 = vmatpush1.bf16.msra.mxu0 0
        %441 = vmatprep.subr.bf16.mxu0 0
        %442 = vmatpush1.bf16.msra.mxu0 0
        %443 = vmatprep.subr.bf16.mxu0 0
        %444 = vmatpush1.bf16.msra.mxu0 0
        %445 = vmatprep.subr.bf16.mxu0 0
        %446 = vmatpush1.bf16.msra.mxu0 0
        %447 = vmatprep.subr.bf16.mxu0 0
        %448 = vmatpush1.bf16.msra.mxu0 0
        %449 = vmatprep.subr.bf16.mxu0 0
        %450 = vmatpush1.bf16.msra.mxu0 0
        %451 = vmatprep.subr.bf16.mxu0 0
        %452 = vmatpush1.bf16.msra.mxu0 0
        %453 = vmatprep.subr.bf16.mxu0 0
        %454 = vmatpush1.bf16.msra.mxu0 0
        %455 = vmatprep.subr.bf16.mxu0 0
        %456 = vmatpush1.bf16.msra.mxu0 0
        %457 = vmatprep.subr.bf16.mxu0 0
        %458 = vmatpush1.bf16.msra.mxu0 0
        %459 = vmatprep.subr.bf16.mxu0 0
        %460 = vmatpush1.bf16.msra.mxu0 0
        %461 = vmatprep.subr.bf16.mxu0 0
        %462 = vmatpush1.bf16.msra.mxu0 0
        %463 = vmatprep.subr.bf16.mxu0 0
        %464 = vmatpush1.bf16.msra.mxu0 0
        %465 = vmatprep.subr.bf16.mxu0 0
        %466 = vmatpush1.bf16.msra.mxu0 0
        %467 = vmatprep.subr.bf16.mxu0 0
        %468 = vmatpush1.bf16.msra.mxu0 0
        %469 = vmatprep.mubr.bf16.mxu0 0
        %470 = vmatmul.mubr.bf16.gmra.mrb[0].mxu0 %v432
        %v471 = vpop.f32.mrb[0].mxu0
        %v472 = vadd.f32 0.0, %v471
        %v473 = vpop.f32.mrb[0].mxu0
        %v474 = vpop.f32.mrb[0].mxu0
        %v475 = vpop.f32.mrb[0].mxu0
        %476 = vdwg.mxu0
        %v477 = vadd.f32 %v423, %v472
        %v478 = vld [vmem:[%s2] sm:$0xff]
        %480 = vset.pattern.permute.xlu0 0
        %481 = vperm.xlu0 %480, %v478
        %v482 = vpop.permute.xlu0 %481
        %v484 = vadd.f32 %v477, %v482
        %v485 = vmax.f32 %v484, 0.0
        %v486 = vpack.c.bf16 %v485, %v485
        %vm487 = vcmask 125952
        %488 = vst.msk [vmem:[#allocation3 + $0x4] sm:$0xf] %vm487, %v486
        %v489 = vld [vmem:[%s3] sm:$0xf]
        %v490 = vld [vmem:[#allocation3] sm:$0xff]
        %s491 = scalar_lea.vmem %s3, 4
        %v492 = vld [vmem:[%s491] sm:$0xf]
        %v494 = vunpack.c.l.b16 %v490
        %v495 = vunpack.c.h.b16 %v490
        %v496 = vpack.c.b16 %v494, %v494
        %v497 = vpack.c.b16 %v495, %v495
        %498 = vrot.lane.b32.xlu0 %v496, 2
        %v499 = vpop.permute.xlu0 %498
        %500 = vrot.lane.b32.xlu0 %v497, 2
        %v501 = vpop.permute.xlu0 %500
        %v502 = vsel %vm326, %v499, %v501
        %vm503 = vcmask 64512
        %v505 = vsel %vm503, %v492, 0
        %vm507 = vcmask 1043456
        %v509 = vsel %vm507, %v502, 0
        %511 = vmatprep.subr.bf16.mxu0 0
        %512 = vmatpush1.bf16.msra.mxu0 %v509
        %513 = vmatprep.subr.bf16.mxu0 0
        %514 = vmatpush1.bf16.msra.mxu0 0
        %515 = vmatprep.subr.bf16.mxu0 0
        %516 = vmatpush1.bf16.msra.mxu0 0
        %517 = vmatprep.subr.bf16.mxu0 0
        %518 = vmatpush1.bf16.msra.mxu0 0
        %519 = vmatprep.subr.bf16.mxu0 0
        %520 = vmatpush1.bf16.msra.mxu0 0
        %521 = vmatprep.subr.bf16.mxu0 0
        %522 = vmatpush1.bf16.msra.mxu0 0
        %523 = vmatprep.subr.bf16.mxu0 0
        %524 = vmatpush1.bf16.msra.mxu0 0
        %525 = vmatprep.subr.bf16.mxu0 0
        %526 = vmatpush1.bf16.msra.mxu0 0
        %527 = vmatprep.subr.bf16.mxu0 0
        %528 = vmatpush1.bf16.msra.mxu0 0
        %529 = vmatprep.subr.bf16.mxu0 0
        %530 = vmatpush1.bf16.msra.mxu0 0
        %531 = vmatprep.subr.bf16.mxu0 0
        %532 = vmatpush1.bf16.msra.mxu0 0
        %533 = vmatprep.subr.bf16.mxu0 0
        %534 = vmatpush1.bf16.msra.mxu0 0
        %535 = vmatprep.subr.bf16.mxu0 0
        %536 = vmatpush1.bf16.msra.mxu0 0
        %537 = vmatprep.subr.bf16.mxu0 0
        %538 = vmatpush1.bf16.msra.mxu0 0
        %539 = vmatprep.subr.bf16.mxu0 0
        %540 = vmatpush1.bf16.msra.mxu0 0
        %541 = vmatprep.subr.bf16.mxu0 0
        %542 = vmatpush1.bf16.msra.mxu0 0
        %543 = vmatprep.mubr.bf16.mxu0 0
        %544 = vmatmul.mubr.bf16.gmra.mrb[0].mxu0 %v505
        %v545 = vpop.f32.mrb[0].mxu0
        %v546 = vadd.f32 0.0, %v545
        %v547 = vpop.f32.mrb[0].mxu0
        %v548 = vpop.f32.mrb[0].mxu0
        %v549 = vpop.f32.mrb[0].mxu0
        %550 = vdwg.mxu0
        %551 = vrot.lane.b32.xlu0 %v496, 4
        %v552 = vpop.permute.xlu0 %551
        %553 = vrot.lane.b32.xlu0 %v497, 4
        %v554 = vpop.permute.xlu0 %553
        %v555 = vsel %vm380, %v552, %v554
        %v557 = vsel %vm503, %v489, 0
        %v560 = vsel %vm507, %v555, 0
        %562 = vmatprep.subr.bf16.mxu0 0
        %563 = vmatpush1.bf16.msra.mxu0 %v560
        %564 = vmatprep.subr.bf16.mxu0 0
        %565 = vmatpush1.bf16.msra.mxu0 0
        %566 = vmatprep.subr.bf16.mxu0 0
        %567 = vmatpush1.bf16.msra.mxu0 0
        %568 = vmatprep.subr.bf16.mxu0 0
        %569 = vmatpush1.bf16.msra.mxu0 0
        %570 = vmatprep.subr.bf16.mxu0 0
        %571 = vmatpush1.bf16.msra.mxu0 0
        %572 = vmatprep.subr.bf16.mxu0 0
        %573 = vmatpush1.bf16.msra.mxu0 0
        %574 = vmatprep.subr.bf16.mxu0 0
        %575 = vmatpush1.bf16.msra.mxu0 0
        %576 = vmatprep.subr.bf16.mxu0 0
        %577 = vmatpush1.bf16.msra.mxu0 0
        %578 = vmatprep.subr.bf16.mxu0 0
        %579 = vmatpush1.bf16.msra.mxu0 0
        %580 = vmatprep.subr.bf16.mxu0 0
        %581 = vmatpush1.bf16.msra.mxu0 0
        %582 = vmatprep.subr.bf16.mxu0 0
        %583 = vmatpush1.bf16.msra.mxu0 0
        %584 = vmatprep.subr.bf16.mxu0 0
        %585 = vmatpush1.bf16.msra.mxu0 0
        %586 = vmatprep.subr.bf16.mxu0 0
        %587 = vmatpush1.bf16.msra.mxu0 0
        %588 = vmatprep.subr.bf16.mxu0 0
        %589 = vmatpush1.bf16.msra.mxu0 0
        %590 = vmatprep.subr.bf16.mxu0 0
        %591 = vmatpush1.bf16.msra.mxu0 0
        %592 = vmatprep.subr.bf16.mxu0 0
        %593 = vmatpush1.bf16.msra.mxu0 0
        %594 = vmatprep.mubr.bf16.mxu0 0
        %595 = vmatmul.mubr.bf16.gmra.mrb[0].mxu0 %v557
        %v596 = vpop.f32.mrb[0].mxu0
        %v597 = vadd.f32 %v546, %v596
        %v598 = vpop.f32.mrb[0].mxu0
        %v599 = vpop.f32.mrb[0].mxu0
        %v600 = vpop.f32.mrb[0].mxu0
        %601 = vdwg.mxu0
        %s602 = scalar_lea.vmem %s3, 8
        %v603 = vld [vmem:[%s602] sm:$0xf]
        %v604 = vld [vmem:[#allocation3 + $0x4] sm:$0xf]
        %v606 = vsel %vm503, %v603, 0
        %v609 = vsel %vm507, %v604, 0
        %611 = vmatprep.subr.bf16.mxu0 0
        %612 = vmatpush1.bf16.msra.mxu0 %v609
        %613 = vmatprep.subr.bf16.mxu0 0
        %614 = vmatpush1.bf16.msra.mxu0 0
        %615 = vmatprep.subr.bf16.mxu0 0
        %616 = vmatpush1.bf16.msra.mxu0 0
        %617 = vmatprep.subr.bf16.mxu0 0
        %618 = vmatpush1.bf16.msra.mxu0 0
        %619 = vmatprep.subr.bf16.mxu0 0
        %620 = vmatpush1.bf16.msra.mxu0 0
        %621 = vmatprep.subr.bf16.mxu0 0
        %622 = vmatpush1.bf16.msra.mxu0 0
        %623 = vmatprep.subr.bf16.mxu0 0
        %624 = vmatpush1.bf16.msra.mxu0 0
        %625 = vmatprep.subr.bf16.mxu0 0
        %626 = vmatpush1.bf16.msra.mxu0 0
        %627 = vmatprep.subr.bf16.mxu0 0
        %628 = vmatpush1.bf16.msra.mxu0 0
        %629 = vmatprep.subr.bf16.mxu0 0
        %630 = vmatpush1.bf16.msra.mxu0 0
        %631 = vmatprep.subr.bf16.mxu0 0
        %632 = vmatpush1.bf16.msra.mxu0 0
        %633 = vmatprep.subr.bf16.mxu0 0
        %634 = vmatpush1.bf16.msra.mxu0 0
        %635 = vmatprep.subr.bf16.mxu0 0
        %636 = vmatpush1.bf16.msra.mxu0 0
        %637 = vmatprep.subr.bf16.mxu0 0
        %638 = vmatpush1.bf16.msra.mxu0 0
        %639 = vmatprep.subr.bf16.mxu0 0
        %640 = vmatpush1.bf16.msra.mxu0 0
        %641 = vmatprep.subr.bf16.mxu0 0
        %642 = vmatpush1.bf16.msra.mxu0 0
        %643 = vmatprep.mubr.bf16.mxu0 0
        %644 = vmatmul.mubr.bf16.gmra.mrb[0].mxu0 %v606
        %v645 = vpop.f32.mrb[0].mxu0
        %v646 = vadd.f32 0.0, %v645
        %v647 = vpop.f32.mrb[0].mxu0
        %v648 = vpop.f32.mrb[0].mxu0
        %v649 = vpop.f32.mrb[0].mxu0
        %650 = vdwg.mxu0
        %v651 = vadd.f32 %v597, %v646
        %v652 = vld [vmem:[%s4] sm:$0xff]
        %654 = vset.pattern.permute.xlu0 0
        %655 = vperm.xlu0 %654, %v652
        %v656 = vpop.permute.xlu0 %655
        %v658 = vadd.f32 %v651, %v656
        %v659 = vmax.f32 %v658, 0.0
        %v660 = vld [vmem:[%s5] sm:$0xf]
        %v661 = vld [vmem:[%s298] sm:$0x3]
        %v662 = vld [vmem:[%s6] sm:$0xff]
        %664 = vset.pattern.permute.xlu0 0
        %665 = vperm.xlu0 %664, %v662
        %v666 = vpop.permute.xlu0 %665
        %v669 = vsel %vm328, %v660, 0
        %v672 = vsel %vm332, %v661, 0
        %674 = vmatprep.subr.bf16.mxu0 0
        %675 = vmatpush1.bf16.msra.mxu0 %v672
        %676 = vmatprep.subr.bf16.mxu0 0
        %677 = vmatpush1.bf16.msra.mxu0 0
        %678 = vmatprep.subr.bf16.mxu0 0
        %679 = vmatpush1.bf16.msra.mxu0 0
        %680 = vmatprep.subr.bf16.mxu0 0
        %681 = vmatpush1.bf16.msra.mxu0 0
        %682 = vmatprep.subr.bf16.mxu0 0
        %683 = vmatpush1.bf16.msra.mxu0 0
        %684 = vmatprep.subr.bf16.mxu0 0
        %685 = vmatpush1.bf16.msra.mxu0 0
        %686 = vmatprep.subr.bf16.mxu0 0
        %687 = vmatpush1.bf16.msra.mxu0 0
        %688 = vmatprep.subr.bf16.mxu0 0
        %689 = vmatpush1.bf16.msra.mxu0 0
        %690 = vmatprep.subr.bf16.mxu0 0
        %691 = vmatpush1.bf16.msra.mxu0 0
        %692 = vmatprep.subr.bf16.mxu0 0
        %693 = vmatpush1.bf16.msra.mxu0 0
        %694 = vmatprep.subr.bf16.mxu0 0
        %695 = vmatpush1.bf16.msra.mxu0 0
        %696 = vmatprep.subr.bf16.mxu0 0
        %697 = vmatpush1.bf16.msra.mxu0 0
        %698 = vmatprep.subr.bf16.mxu0 0
        %699 = vmatpush1.bf16.msra.mxu0 0
        %700 = vmatprep.subr.bf16.mxu0 0
        %701 = vmatpush1.bf16.msra.mxu0 0
        %702 = vmatprep.subr.bf16.mxu0 0
        %703 = vmatpush1.bf16.msra.mxu0 0
        %704 = vmatprep.subr.bf16.mxu0 0
        %705 = vmatpush1.bf16.msra.mxu0 0
        %706 = vmatprep.mubr.bf16.mxu0 0
        %707 = vmatmul.mubr.bf16.gmra.mrb[0].mxu0 %v669
        %v708 = vpop.f32.mrb[0].mxu0
        %v709 = vadd.f32 %v666, %v708
        %v710 = vpop.f32.mrb[0].mxu0
        %v711 = vpop.f32.mrb[0].mxu0
        %v712 = vpop.f32.mrb[0].mxu0
        %713 = vdwg.mxu0
        %v714 = vadd.f32 %v659, %v709
        %v715 = vmax.f32 %v714, 0.0
        %vm716 = vcmask 130048
        %717 = vst.msk [vmem:[%s291] sm:$0xff] %vm716, %v715
        %s718 = sand.u32 %s197, 1
        %s719 = scalar_lea.sflag [#allocation5], %s718
        %s720 = sand.u32 %s197, 1
        %s721 = smul.addr %s720, 8
        %s722 = scalar_lea.vmem [#allocation4], %s721
        // Predicated region
        $region53: #{tpu_custom_call.1} parent=47 // pred_check
          %p723 = pneg %p207
        $region54: #{tpu_custom_call.1} parent=47 // pred_check_branch
          %725 = sbr.rel (%p723) target = $region56
        $region55: #{tpu_custom_call.1} parent=47 // pred_region
          %s727 = ssub.s32 128, 128
          %728 = vsyncadd %s719, %s727
          %s729 = sadd.s32 %s26, %s25
          %s730 = smul.addr %s729, 128
          %s731 = scalar_lea.hbm %s7, %s730
          %s733 = sshll.u32 %s722, 4
          %s734 = int_to_ptr.vmem [resolvable:$true] %s733
          %736 = dma.vmem_to_hbm [thread:$0]  %s734, 128, %s731, %s719
        $region56: #{tpu_custom_call.1} parent=47 // pred_fallthru
          _
      $region48: #{tpu_custom_call.1} parent=5 // pred_fallthru
        _
      %p737 = scmp.le.s32.totalorder 2, %s16
      // Predicated region
      $region57: #{tpu_custom_call.1} parent=5 // pred_check
        %p738 = pneg %p737
      $region58: #{tpu_custom_call.1} parent=5 // pred_check_branch
        %740 = sbr.rel (%p738) target = $region60
      $region59: #{tpu_custom_call.1} parent=5 // pred_region
        %s741 = ssub.s32 %s16, 2
        // Predicated region
        $region61: #{tpu_custom_call.1} parent=59 // pred_check
          %p742 = pneg %p213
        $region62: #{tpu_custom_call.1} parent=59 // pred_check_branch
          %744 = sbr.rel (%p742) target = $region64
        $region63: #{tpu_custom_call.1} parent=59 // pred_region
          %s745 = sand.u32 %s198, 1
          %s746 = scalar_lea.sflag [#allocation5], %s745
          %s747 = sand.u32 %s198, 1
          %s748 = smul.addr %s747, 8
          %s749 = scalar_lea.vmem [#allocation4], %s748
          %750 = dma.done %s746, 128
        $region64: #{tpu_custom_call.1} parent=59 // pred_fallthru
          _
      $region60: #{tpu_custom_call.1} parent=5 // pred_fallthru
        _
    $region6: #{tpu_custom_call.1} parent=1 // loop_footer
      %s20 = sadd.s32 1, %s16
    $region7: #{tpu_custom_call.1} parent=1 // loop_footer_branch
      %15 = sbr.rel target = $region3
    $region8: #{tpu_custom_call.1} parent=1 // loop_exit
      _
    %751 = vsyncpa [#allocation5], 1
    %s752 = scalar_lea.sflag [#allocation5], 1
    %753 = vsyncpa %s752, 1

</llo_original>
